<compile_context>
chip_gen: v7x
topology: tpu7x:2x2x1
jax: 0.10.0
libtpu: 0.0.40
codegen_flags: <defaults>
</compile_context>

<pallas_src>
import functools
import math

import jax
import jax.numpy as jnp
from jax.experimental import pallas as pl
from jax.experimental.pallas import tpu as pltpu


def _layer_norm(v, g, b, eps=1e-6):
    # NOTE: eps=1e-6 (OpenNMT convention); PyTorch nn.LayerNorm default is 1e-5.
    mu = jnp.mean(v, axis=-1, keepdims=True)
    var = jnp.mean((v - mu) ** 2, axis=-1, keepdims=True)
    return (v - mu) * jax.lax.rsqrt(var + eps) * g + b


# ---------------------------------------------------------------------------
# Constant-block specs, single-buffered when the jax version supports it.
# ---------------------------------------------------------------------------
def _buffered_one():
    buffered = getattr(pl, "Buffered", None)
    if buffered is None:
        return None
    try:
        return buffered(1)
    except Exception:  # pragma: no cover - defensive
        return None


_BUF1 = _buffered_one()


def _const_spec(shape, single_buffer=True):
    """BlockSpec with a constant index map (weights / LN params / biases)."""
    n = len(shape)
    idx = lambda *_a, _n=n: (0,) * _n   # variadic: works with/without prefetch args
    if single_buffer and _BUF1 is not None:
        try:
            return pl.BlockSpec(shape, idx, pipeline_mode=_BUF1)
        except TypeError:               # jax without the pipeline_mode kwarg
            pass
    return pl.BlockSpec(shape, idx)


# ---------------------------------------------------------------------------
# Kernel 1: fused pre-norm + QKV projection (one full-width MXU matmul).
# ---------------------------------------------------------------------------
def qkv_proj_kernel(x_ref, ln1_g, ln1_b, w_qkv, b_qkv, q_ref, k_ref, v_ref):
    """grid = (batch, S // tile). One (TR, D) @ (D, 3D) bf16 matmul per tile."""
    f32, bf16 = jnp.float32, jnp.bfloat16
    D = x_ref.shape[-1]
    xn = _layer_norm(x_ref[0], ln1_g[0], ln1_b[0]).astype(bf16)
    qkv = jnp.dot(xn, w_qkv[...], preferred_element_type=f32) + b_qkv[0]
    qkv = qkv.astype(bf16)
    q_ref[0] = qkv[:, :D]               # 1/sqrt(d_k) already folded into Wq/bq
    k_ref[0] = qkv[:, D:2 * D]
    v_ref[0] = qkv[:, 2 * D:]


def run_qkv_projection(x, kp, *, q_tile, single_buffer_consts=True,
                       vmem_limit_bytes=48 * 1024 * 1024):
    B, S, D = x.shape
    assert S % q_tile == 0
    nqt = S // q_tile

    def _call(single_buf):
        cs = functools.partial(_const_spec, single_buffer=single_buf)
        return pl.pallas_call(
            qkv_proj_kernel,
            out_shape=tuple(jax.ShapeDtypeStruct((B, S, D), jnp.bfloat16)
                            for _ in range(3)),
            grid_spec=pltpu.PrefetchScalarGridSpec(
                num_scalar_prefetch=0,
                grid=(B, nqt),
                in_specs=[
                    pl.BlockSpec((1, q_tile, D), lambda b, q: (b, q, 0)),
                    cs((1, D)), cs((1, D)),              # ln1 gamma / beta
                    cs((D, 3 * D)), cs((1, 3 * D)),      # fused W_qkv / b_qkv
                ],
                out_specs=tuple(
                    pl.BlockSpec((1, q_tile, D), lambda b, q: (b, q, 0))
                    for _ in range(3)),
            ),
            compiler_params=pltpu.CompilerParams(
                dimension_semantics=("parallel", "parallel"),
                vmem_limit_bytes=vmem_limit_bytes),
        )(x, kp["ln1_g"], kp["ln1_b"], kp["w_qkv"], kp["b_qkv"])

    if single_buffer_consts and _BUF1 is not None:
        try:
            return _call(True)
        except Exception:
            pass
    return _call(False)


# ---------------------------------------------------------------------------
# Kernel 2: masked multi-head self-attention + residual + pre-norm FFN.
# ---------------------------------------------------------------------------
def attn_ffn_kernel(num_heads, d_k, return_attn, attn_dtype,
                    lens_ref,                      # scalar prefetch: (B,) int32
                    x_ref, q_ref, k_ref, v_ref,
                    wo, bo, ln2_g, ln2_b, w1, b1, w2, b2,
                    *outs_and_scratch):
    """grid = (batch, S // q_tile); both axes independent ("parallel")."""
    if return_attn:
        out_ref, attn_ref, ctx_sc = outs_and_scratch
    else:
        out_ref, ctx_sc = outs_and_scratch
        attn_ref = None

    f32, bf16 = jnp.float32, jnp.bfloat16
    b = pl.program_id(0)
    TQ = x_ref.shape[1]
    S = k_ref.shape[1]

    # Key-padding additive bias built in-kernel (one compare+select per tile,
    # outside the head loop) -- no (B, S, S) f32 bias array in HBM.
    length = lens_ref[b]
    col = jax.lax.broadcasted_iota(jnp.int32, (TQ, S), 1)
    bias = jnp.where(col < length, jnp.float32(0.0), jnp.float32(-1e18))

    x_q = x_ref[0]                        # (TQ, D) f32 residual input
    q_all = q_ref[0]                      # (TQ, D) bf16 (LN'd, projected, scaled)
    k_all = k_ref[0]                      # (S, D)  bf16
    v_all = v_ref[0]                      # (S, D)  bf16

    # Static unroll over heads (num_heads is small here).
    # TODO(synk): switch to lax.fori_loop with dynamic d_k-lane slices when
    # num_heads is large enough for vreg pressure / bundle-cache to matter.
    for h in range(num_heads):
        lo, hi = h * d_k, (h + 1) * d_k
        qh = q_all[:, lo:hi]                                   # (TQ, d_k)
        kh = k_all[:, lo:hi]                                   # (S, d_k)
        vh = v_all[:, lo:hi]                                   # (S, d_k)
        s = jax.lax.dot_general(qh, kh, (((1,), (1,)), ((), ())),
                                preferred_element_type=f32)    # (TQ, S)
        s = s + bias
        s = s - jnp.max(s, axis=-1, keepdims=True)
        p = jnp.exp(s)
        p = p * pl.reciprocal(jnp.sum(p, axis=-1, keepdims=True), approx=True)
        if attn_ref is not None:
            attn_ref[0, h] = p.astype(attn_dtype)              # lane-dense (TQ, S)
        ctx = jnp.dot(p.astype(bf16), vh,
                      preferred_element_type=f32)              # (TQ, d_k)
        ctx_sc[:, lo:hi] = ctx                                 # lane-dense scratch

    # Single dense output projection over all heads (full-K MXU matmul).
    attn_out = jnp.dot(ctx_sc[...].astype(bf16), wo[...],
                       preferred_element_type=f32) + bo[0]
    res1 = x_q + attn_out                                      # dropout == identity

    # Pre-norm position-wise feed forward.
    xn2 = _layer_norm(res1, ln2_g[0], ln2_b[0]).astype(bf16)
    inter = jnp.maximum(
        jnp.dot(xn2, w1[...], preferred_element_type=f32) + b1[0], 0.0)
    ffn = jnp.dot(inter.astype(bf16), w2[...], preferred_element_type=f32) + b2[0]
    out_ref[0] = ffn + res1


def run_attention_ffn(x, q, k, v, sent_len, kp, num_heads, d_k, *,
                      q_tile, return_attn=True, attn_dtype=jnp.bfloat16,
                      single_buffer_consts=True,
                      vmem_limit_bytes=48 * 1024 * 1024):
    B, S, D = x.shape
    d_ff = kp["w1"].shape[1]
    assert S % q_tile == 0
    if return_attn and attn_dtype == jnp.bfloat16:
        assert q_tile == S or q_tile % 16 == 0, "bf16 blocks need 16-row tiles"
    nqt = S // q_tile
    sent_len = sent_len.astype(jnp.int32)

    kernel = functools.partial(attn_ffn_kernel, num_heads, d_k,
                               return_attn, attn_dtype)

    def _call(single_buf):
        cs = functools.partial(_const_spec, single_buffer=single_buf)
        in_specs = [
            pl.BlockSpec((1, q_tile, D), lambda b, qi, lens: (b, qi, 0)),  # x
            pl.BlockSpec((1, q_tile, D), lambda b, qi, lens: (b, qi, 0)),  # Q tile
            pl.BlockSpec((1, S, D), lambda b, qi, lens: (b, 0, 0)),        # K (full)
            pl.BlockSpec((1, S, D), lambda b, qi, lens: (b, 0, 0)),        # V (full)
            cs((D, D)), cs((1, D)),            # Wo, bo
            cs((1, D)), cs((1, D)),            # ln2 gamma / beta
            cs((D, d_ff)), cs((1, d_ff)),      # W1, b1
            cs((d_ff, D)), cs((1, D)),         # W2, b2
        ]
        out_specs = [pl.BlockSpec((1, q_tile, D), lambda b, qi, lens: (b, qi, 0))]
        out_shape = [jax.ShapeDtypeStruct((B, S, D), jnp.float32)]
        if return_attn:
            out_specs.append(pl.BlockSpec((1, num_heads, q_tile, S),
                                          lambda b, qi, lens: (b, 0, qi, 0)))
            out_shape.append(jax.ShapeDtypeStruct((B, num_heads, S, S), attn_dtype))
        return pl.pallas_call(
            kernel,
            out_shape=tuple(out_shape),
            grid_spec=pltpu.PrefetchScalarGridSpec(
                num_scalar_prefetch=1,
                grid=(B, nqt),
                in_specs=in_specs,
                out_specs=tuple(out_specs),
                scratch_shapes=[pltpu.VMEM((q_tile, D), jnp.float32)],  # head ctx
            ),
            compiler_params=pltpu.CompilerParams(
                # Both axes are independent -> both TCs usable on v7x.
                dimension_semantics=("parallel", "parallel"),
                # v5e/v6e: can be raised to ~96MB to allow q_tile=256 at long S.
                vmem_limit_bytes=vmem_limit_bytes),
        )(sent_len, x, q, k, v,
          kp["wo"], kp["bo"], kp["ln2_g"], kp["ln2_b"],
          kp["w1"], kp["b1"], kp["w2"], kp["b2"])

    if single_buffer_consts and _BUF1 is not None:
        try:
            outs = _call(True)
        except Exception:
            outs = _call(False)
    else:
        outs = _call(False)

    if return_attn:
        out, attn = outs
        return out, attn
    out = outs[0] if isinstance(outs, (tuple, list)) else outs
    return out, None


# ---------------------------------------------------------------------------
# Parameter handling.
# ---------------------------------------------------------------------------
def init_layer_params(key, d_model, d_ff):
    """Dense float32 parameters, mirroring the PyTorch layer."""
    ks = jax.random.split(key, 6)
    s = 0.05
    f32 = jnp.float32
    return {
        "ln1_g": jnp.ones((1, d_model), f32),
        "ln1_b": jnp.zeros((1, d_model), f32),
        "wq": (jax.random.normal(ks[0], (d_model, d_model)) * s).astype(f32),
        "bq": jnp.zeros((1, d_model), f32),
        "wk": (jax.random.normal(ks[1], (d_model, d_model)) * s).astype(f32),
        "bk": jnp.zeros((1, d_model), f32),
        "wv": (jax.random.normal(ks[2], (d_model, d_model)) * s).astype(f32),
        "bv": jnp.zeros((1, d_model), f32),
        "wo": (jax.random.normal(ks[3], (d_model, d_model)) * s).astype(f32),
        "bo": jnp.zeros((1, d_model), f32),
        "ln2_g": jnp.ones((1, d_model), f32),
        "ln2_b": jnp.zeros((1, d_model), f32),
        "w1": (jax.random.normal(ks[4], (d_model, d_ff)) * s).astype(f32),
        "b1": jnp.zeros((1, d_ff), f32),
        "w2": (jax.random.normal(ks[5], (d_ff, d_model)) * s).astype(f32),
        "b2": jnp.zeros((1, d_model), f32),
    }


def prepare_layer_params(p, num_heads, d_k):
    """Kernel layout: fused (D,3D) QKV weight (1/sqrt(d_k) folded into Wq),
    dense Wo, bf16 matmul operands, f32 biases / LN params."""
    D = p["wq"].shape[0]
    assert D == num_heads * d_k
    scale = 1.0 / math.sqrt(d_k)
    bf16 = jnp.bfloat16
    w_qkv = jnp.concatenate([p["wq"] * scale, p["wk"], p["wv"]], axis=1)
    b_qkv = jnp.concatenate([p["bq"] * scale, p["bk"], p["bv"]], axis=1)
    # TODO(synk): on v7x, the weights below could be cast to fp8 (f32 accum)
    # to halve resident weight VMEM and roughly double FFN MXU throughput.
    return {
        "ln1_g": p["ln1_g"], "ln1_b": p["ln1_b"],
        "w_qkv": w_qkv.astype(bf16), "b_qkv": b_qkv.astype(jnp.float32),
        "wo": p["wo"].astype(bf16), "bo": p["bo"],
        "ln2_g": p["ln2_g"], "ln2_b": p["ln2_b"],
        "w1": p["w1"].astype(bf16), "b1": p["b1"],
        "w2": p["w2"].astype(bf16), "b2": p["b2"],
    }


def transformer_encoder_forward(inp, sent_len_rep, fc_mask_rep, layer_params,
                                num_heads, d_k, *, q_tile=None,
                                return_attn=True, attn_dtype=jnp.bfloat16):
    """Mirrors TransformerEncoder.forward: returns (representations,
    attention_scores) lists, one entry per layer."""
    assert inp.shape[0] == sent_len_rep.shape[0]
    B, S, D = inp.shape
    if q_tile is None:
        q_tile = S if S <= 128 else 128   # v6e: sweep up to 256 for long S
    # TODO(synk): the kernels rebuild the key-padding mask from sent_len_rep
    # (standard OpenNMT usage of fc_mask); arbitrary per-(i,j) fc_mask
    # patterns would need an explicit bias/mask block added back.
    del fc_mask_rep
    out = inp
    representations, attention_scores = [], []
    for kp in layer_params:
        q, k, v = run_qkv_projection(out, kp, q_tile=q_tile)
        out, attn = run_attention_ffn(out, q, k, v, sent_len_rep, kp,
                                      num_heads, d_k, q_tile=q_tile,
                                      return_attn=return_attn,
                                      attn_dtype=attn_dtype)
        representations.append(out)
        attention_scores.append(attn)
    return representations, attention_scores


# ---------------------------------------------------------------------------
# Pure-JAX f32 reference (for the correctness check).
# ---------------------------------------------------------------------------
def _reference_forward(inp, fc_mask, dense_params, num_heads, d_k):
    B, S, D = inp.shape
    bias = jnp.where(~fc_mask, jnp.float32(-1e18), jnp.float32(0.0))
    out = inp
    reps, attns = [], []
    for p in dense_params:
        x = out
        xn = _layer_norm(x, p["ln1_g"][0], p["ln1_b"][0])
        q = xn @ p["wq"] + p["bq"][0]
        k = xn @ p["wk"] + p["bk"][0]
        v = xn @ p["wv"] + p["bv"][0]

        def split(t):
            return t.reshape(B, S, num_heads, d_k).transpose(0, 2, 1, 3)

        qh = split(q) * (1.0 / math.sqrt(d_k))
        kh, vh = split(k), split(v)
        s = jnp.einsum("bhqd,bhkd->bhqk", qh, kh) + bias[:, None]
        s = s - s.max(-1, keepdims=True)
        e = jnp.exp(s)
        attn = e / e.sum(-1, keepdims=True)
        ctx = jnp.einsum("bhqk,bhkd->bhqd", attn, vh)
        ctx = ctx.transpose(0, 2, 1, 3).reshape(B, S, D)
        res1 = x + ctx @ p["wo"] + p["bo"][0]
        xn2 = _layer_norm(res1, p["ln2_g"][0], p["ln2_b"][0])
        ffn = jnp.maximum(xn2 @ p["w1"] + p["b1"][0], 0.0) @ p["w2"] + p["b2"][0]
        out = ffn + res1
        reps.append(out)
        attns.append(attn)
    return reps, attns


if __name__ == "__main__":
    # Small configuration consistent with the module's constraints:
    # d_model == d_k * num_heads, d_k == d_v.
    num_layers = 2
    d_model = 32
    num_heads = 4
    d_k = d_v = 8
    d_ff = 64
    B, S = 2, 32
    TQ = 16          # two query tiles per sequence -> exercises the (B, S//TQ) grid

    key = jax.random.PRNGKey(0)
    k_in, k_layers = jax.random.split(key)

    inp = jax.random.normal(k_in, (B, S, d_model), dtype=jnp.float32)
    sent_len_rep = jnp.array([S, S - 7], dtype=jnp.int32)

    # fc_mask_rep[b, i, j] = True iff token j is a valid key position.
    pos = jnp.arange(S)
    valid = pos[None, :] < sent_len_rep[:, None]                 # (B, S)
    fc_mask_rep = jnp.broadcast_to(valid[:, None, :], (B, S, S))

    # Dependency-structure inputs (accepted for interface parity; unused here).
    adj_mask_rep = jnp.ones((B, S, S), jnp.float32)
    deprel_mat_rep = jnp.zeros((B, S, S), jnp.int32)

    layer_keys = jax.random.split(k_layers, num_layers)
    dense_params = [init_layer_params(layer_keys[i], d_model, d_ff)
                    for i in range(num_layers)]
    layer_params = [prepare_layer_params(p, num_heads, d_k) for p in dense_params]

    representations, attention_scores = transformer_encoder_forward(
        inp, sent_len_rep, fc_mask_rep, layer_params, num_heads, d_k, q_tile=TQ)

    for r in representations:
        jax.block_until_ready(r)
    for a in attention_scores:
        jax.block_until_ready(a)

    assert representations[-1].shape == (B, S, d_model)
    assert attention_scores[-1].shape == (B, num_heads, S, S)

    # Correctness check against a pure-JAX f32 reference (bf16 matmuls and
    # bf16 attention output in the kernels -> loose tolerances).
    ref_reps, ref_attns = _reference_forward(
        inp, fc_mask_rep, dense_params, num_heads, d_k)
    assert bool(jnp.allclose(representations[-1], ref_reps[-1], atol=5e-2))
    assert bool(jnp.allclose(attention_scores[-1].astype(jnp.float32),
                             ref_attns[-1], atol=3e-2))

    print("KERNEL_OK")
</pallas_src>

<mosaic_0001>
module attributes {stable_mosaic.version = 11 : i64} {
  func.func @qkv_proj_kernel(%arg0: i32, %arg1: i32, %arg2: memref<1x16x32xf32, #tpu.memory_space<vmem>>, %arg3: memref<1x32xf32, #tpu.memory_space<vmem>>, %arg4: memref<1x32xf32, #tpu.memory_space<vmem>>, %arg5: memref<32x96xbf16, #tpu.memory_space<vmem>>, %arg6: memref<1x96xf32, #tpu.memory_space<vmem>>, %arg7: memref<1x16x32xbf16, #tpu.memory_space<vmem>>, %arg8: memref<1x16x32xbf16, #tpu.memory_space<vmem>>, %arg9: memref<1x16x32xbf16, #tpu.memory_space<vmem>>) attributes {dimension_semantics = [#tpu.dimension_semantics<parallel>, #tpu.dimension_semantics<parallel>], iteration_bounds = array<i64: 2, 2>, scalar_prefetch = 0 : i64, scratch_operands = 0 : i64, tpu.core_type = #tpu.core_type<tc>, window_params = [{transform_indices = @transform_0, window_bounds = array<i64: 1, 16, 32>}, {pipeline_mode = #tpu.pipeline_mode<synchronous>, transform_indices = @transform_1, window_bounds = array<i64: 1, 32>}, {pipeline_mode = #tpu.pipeline_mode<synchronous>, transform_indices = @transform_2, window_bounds = array<i64: 1, 32>}, {pipeline_mode = #tpu.pipeline_mode<synchronous>, transform_indices = @transform_3, window_bounds = array<i64: 32, 96>}, {pipeline_mode = #tpu.pipeline_mode<synchronous>, transform_indices = @transform_4, window_bounds = array<i64: 1, 96>}, {transform_indices = @transform_5, window_bounds = array<i64: 1, 16, 32>}, {transform_indices = @transform_6, window_bounds = array<i64: 1, 16, 32>}, {transform_indices = @transform_7, window_bounds = array<i64: 1, 16, 32>}]} {
    %c0 = arith.constant 0 : index
    %c0_0 = arith.constant 0 : index
    %c0_1 = arith.constant 0 : index
    %0 = vector.load %arg2[%c0, %c0_0, %c0_1] : memref<1x16x32xf32, #tpu.memory_space<vmem>>, vector<1x16x32xf32>
    %1 = vector.shape_cast %0 : vector<1x16x32xf32> to vector<16x32xf32>
    %c0_2 = arith.constant 0 : index
    %c0_3 = arith.constant 0 : index
    %2 = vector.load %arg3[%c0_2, %c0_3] : memref<1x32xf32, #tpu.memory_space<vmem>>, vector<1x32xf32>
    %3 = vector.shape_cast %2 : vector<1x32xf32> to vector<32xf32>
    %c0_4 = arith.constant 0 : index
    %c0_5 = arith.constant 0 : index
    %4 = vector.load %arg4[%c0_4, %c0_5] : memref<1x32xf32, #tpu.memory_space<vmem>>, vector<1x32xf32>
    %5 = vector.shape_cast %4 : vector<1x32xf32> to vector<32xf32>
    %cst = arith.constant dense<0.000000e+00> : vector<16xf32>
    %6 = vector.multi_reduction <add>, %1, %cst [1] : vector<16x32xf32> to vector<16xf32>
    %7 = vector.shape_cast %6 : vector<16xf32> to vector<16x1xf32>
    %cst_6 = arith.constant 3.200000e+01 : f32
    %8 = vector.broadcast %cst_6 : f32 to vector<16x1xf32>
    %9 = arith.divf %7, %8 : vector<16x1xf32>
    %10 = vector.broadcast %9 : vector<16x1xf32> to vector<16x32xf32>
    %11 = arith.subf %1, %10 : vector<16x32xf32>
    %12 = arith.mulf %11, %11 : vector<16x32xf32>
    %cst_7 = arith.constant dense<0.000000e+00> : vector<16xf32>
    %13 = vector.multi_reduction <add>, %12, %cst_7 [1] : vector<16x32xf32> to vector<16xf32>
    %14 = vector.shape_cast %13 : vector<16xf32> to vector<16x1xf32>
    %cst_8 = arith.constant 3.200000e+01 : f32
    %15 = vector.broadcast %cst_8 : f32 to vector<16x1xf32>
    %16 = arith.divf %14, %15 : vector<16x1xf32>
    %17 = vector.broadcast %9 : vector<16x1xf32> to vector<16x32xf32>
    %18 = arith.subf %1, %17 : vector<16x32xf32>
    %cst_9 = arith.constant 9.99999997E-7 : f32
    %19 = vector.broadcast %cst_9 : f32 to vector<16x1xf32>
    %20 = arith.addf %16, %19 : vector<16x1xf32>
    %21 = math.rsqrt %20 : vector<16x1xf32>
    %22 = vector.broadcast %21 : vector<16x1xf32> to vector<16x32xf32>
    %23 = arith.mulf %18, %22 : vector<16x32xf32>
    %24 = vector.shape_cast %3 : vector<32xf32> to vector<1x32xf32>
    %25 = vector.broadcast %24 : vector<1x32xf32> to vector<16x32xf32>
    %26 = arith.mulf %23, %25 : vector<16x32xf32>
    %27 = vector.shape_cast %5 : vector<32xf32> to vector<1x32xf32>
    %28 = vector.broadcast %27 : vector<1x32xf32> to vector<16x32xf32>
    %29 = arith.addf %26, %28 : vector<16x32xf32>
    %30 = arith.truncf %29 : vector<16x32xf32> to vector<16x32xbf16>
    %c0_10 = arith.constant 0 : index
    %c0_11 = arith.constant 0 : index
    %31 = vector.load %arg5[%c0_10, %c0_11] : memref<32x96xbf16, #tpu.memory_space<vmem>>, vector<32x96xbf16>
    %cst_12 = arith.constant dense<0.000000e+00> : vector<16x96xf32>
    %32 = tpu.matmul %30, %31, %cst_12 {dimension_numbers = #tpu.dot_dimension_numbers<[1], [0], [0], [1], [0, 0, 1, 1], [], []>} : vector<16x32xbf16>, vector<32x96xbf16>, vector<16x96xf32> -> vector<16x96xf32>
    %c0_13 = arith.constant 0 : index
    %c0_14 = arith.constant 0 : index
    %33 = vector.load %arg6[%c0_13, %c0_14] : memref<1x96xf32, #tpu.memory_space<vmem>>, vector<1x96xf32>
    %34 = vector.shape_cast %33 : vector<1x96xf32> to vector<96xf32>
    %35 = vector.shape_cast %34 : vector<96xf32> to vector<1x96xf32>
    %36 = vector.broadcast %35 : vector<1x96xf32> to vector<16x96xf32>
    %37 = arith.addf %32, %36 : vector<16x96xf32>
    %38 = arith.truncf %37 : vector<16x96xf32> to vector<16x96xbf16>
    %39 = vector.extract_strided_slice %38 {offsets = [0, 0], sizes = [16, 32], strides = [1, 1]} : vector<16x96xbf16> to vector<16x32xbf16>
    %c0_15 = arith.constant 0 : index
    %c0_16 = arith.constant 0 : index
    %c0_17 = arith.constant 0 : index
    %40 = vector.load %arg7[%c0_15, %c0_16, %c0_17] : memref<1x16x32xbf16, #tpu.memory_space<vmem>>, vector<1x16x32xbf16>
    %41 = vector.shape_cast %40 : vector<1x16x32xbf16> to vector<16x32xbf16>
    %42 = vector.shape_cast %39 : vector<16x32xbf16> to vector<1x16x32xbf16>
    tpu.vector_store %arg7[%c0_15, %c0_16, %c0_17], %42 {strides = array<i32>} : memref<1x16x32xbf16, #tpu.memory_space<vmem>>, vector<1x16x32xbf16>,
    %43 = vector.extract_strided_slice %38 {offsets = [0, 32], sizes = [16, 32], strides = [1, 1]} : vector<16x96xbf16> to vector<16x32xbf16>
    %c0_18 = arith.constant 0 : index
    %c0_19 = arith.constant 0 : index
    %c0_20 = arith.constant 0 : index
    %44 = vector.load %arg8[%c0_18, %c0_19, %c0_20] : memref<1x16x32xbf16, #tpu.memory_space<vmem>>, vector<1x16x32xbf16>
    %45 = vector.shape_cast %44 : vector<1x16x32xbf16> to vector<16x32xbf16>
    %46 = vector.shape_cast %43 : vector<16x32xbf16> to vector<1x16x32xbf16>
    tpu.vector_store %arg8[%c0_18, %c0_19, %c0_20], %46 {strides = array<i32>} : memref<1x16x32xbf16, #tpu.memory_space<vmem>>, vector<1x16x32xbf16>,
    %47 = vector.extract_strided_slice %38 {offsets = [0, 64], sizes = [16, 32], strides = [1, 1]} : vector<16x96xbf16> to vector<16x32xbf16>
    %c0_21 = arith.constant 0 : index
    %c0_22 = arith.constant 0 : index
    %c0_23 = arith.constant 0 : index
    %48 = vector.load %arg9[%c0_21, %c0_22, %c0_23] : memref<1x16x32xbf16, #tpu.memory_space<vmem>>, vector<1x16x32xbf16>
    %49 = vector.shape_cast %48 : vector<1x16x32xbf16> to vector<16x32xbf16>
    %50 = vector.shape_cast %47 : vector<16x32xbf16> to vector<1x16x32xbf16>
    tpu.vector_store %arg9[%c0_21, %c0_22, %c0_23], %50 {strides = array<i32>} : memref<1x16x32xbf16, #tpu.memory_space<vmem>>, vector<1x16x32xbf16>,
    return
  }
  func.func @transform_0(%arg0: i32, %arg1: i32) -> (i32, i32, i32) {
    %c0_i32 = arith.constant 0 : i32
    %c0_i32_0 = arith.constant 0 : i32
    return %arg0, %arg1, %c0_i32 : i32, i32, i32
  }
  func.func @transform_1(%arg0: i32, %arg1: i32) -> (i32, i32) {
    %c0_i32 = arith.constant 0 : i32
    %c0_i32_0 = arith.constant 0 : i32
    %c0_i32_1 = arith.constant 0 : i32
    return %c0_i32, %c0_i32_0 : i32, i32
  }
  func.func @transform_2(%arg0: i32, %arg1: i32) -> (i32, i32) {
    %c0_i32 = arith.constant 0 : i32
    %c0_i32_0 = arith.constant 0 : i32
    %c0_i32_1 = arith.constant 0 : i32
    return %c0_i32, %c0_i32_0 : i32, i32
  }
  func.func @transform_3(%arg0: i32, %arg1: i32) -> (i32, i32) {
    %c0_i32 = arith.constant 0 : i32
    %c0_i32_0 = arith.constant 0 : i32
    %c0_i32_1 = arith.constant 0 : i32
    return %c0_i32, %c0_i32_0 : i32, i32
  }
  func.func @transform_4(%arg0: i32, %arg1: i32) -> (i32, i32) {
    %c0_i32 = arith.constant 0 : i32
    %c0_i32_0 = arith.constant 0 : i32
    %c0_i32_1 = arith.constant 0 : i32
    return %c0_i32, %c0_i32_0 : i32, i32
  }
  func.func @transform_5(%arg0: i32, %arg1: i32) -> (i32, i32, i32) {
    %c0_i32 = arith.constant 0 : i32
    %c0_i32_0 = arith.constant 0 : i32
    return %arg0, %arg1, %c0_i32 : i32, i32, i32
  }
  func.func @transform_6(%arg0: i32, %arg1: i32) -> (i32, i32, i32) {
    %c0_i32 = arith.constant 0 : i32
    %c0_i32_0 = arith.constant 0 : i32
    return %arg0, %arg1, %c0_i32 : i32, i32, i32
  }
  func.func @transform_7(%arg0: i32, %arg1: i32) -> (i32, i32, i32) {
    %c0_i32 = arith.constant 0 : i32
    %c0_i32_0 = arith.constant 0 : i32
    return %arg0, %arg1, %c0_i32 : i32, i32, i32
  }
}

module attributes {stable_mosaic.version = 11 : i64} {
  func.func @qkv_proj_kernel(%arg0: i32, %arg1: i32, %arg2: memref<1x16x32xf32, #tpu.memory_space<vmem>>, %arg3: memref<1x32xf32, #tpu.memory_space<vmem>>, %arg4: memref<1x32xf32, #tpu.memory_space<vmem>>, %arg5: memref<32x96xbf16, #tpu.memory_space<vmem>>, %arg6: memref<1x96xf32, #tpu.memory_space<vmem>>, %arg7: memref<1x16x32xbf16, #tpu.memory_space<vmem>>, %arg8: memref<1x16x32xbf16, #tpu.memory_space<vmem>>, %arg9: memref<1x16x32xbf16, #tpu.memory_space<vmem>>) attributes {dimension_semantics = [#tpu.dimension_semantics<parallel>, #tpu.dimension_semantics<parallel>], iteration_bounds = array<i64: 2, 2>, scalar_prefetch = 0 : i64, scratch_operands = 0 : i64, tpu.core_type = #tpu.core_type<tc>, window_params = [{transform_indices = @transform_0, window_bounds = array<i64: 1, 16, 32>}, {pipeline_mode = #tpu.pipeline_mode<synchronous>, transform_indices = @transform_1, window_bounds = array<i64: 1, 32>}, {pipeline_mode = #tpu.pipeline_mode<synchronous>, transform_indices = @transform_2, window_bounds = array<i64: 1, 32>}, {pipeline_mode = #tpu.pipeline_mode<synchronous>, transform_indices = @transform_3, window_bounds = array<i64: 32, 96>}, {pipeline_mode = #tpu.pipeline_mode<synchronous>, transform_indices = @transform_4, window_bounds = array<i64: 1, 96>}, {transform_indices = @transform_5, window_bounds = array<i64: 1, 16, 32>}, {transform_indices = @transform_6, window_bounds = array<i64: 1, 16, 32>}, {transform_indices = @transform_7, window_bounds = array<i64: 1, 16, 32>}]} {
    %c0 = arith.constant 0 : index
    %c0_0 = arith.constant 0 : index
    %c0_1 = arith.constant 0 : index
    %0 = vector.load %arg2[%c0, %c0_0, %c0_1] : memref<1x16x32xf32, #tpu.memory_space<vmem>>, vector<1x16x32xf32>
    %1 = vector.shape_cast %0 : vector<1x16x32xf32> to vector<16x32xf32>
    %c0_2 = arith.constant 0 : index
    %c0_3 = arith.constant 0 : index
    %2 = vector.load %arg3[%c0_2, %c0_3] : memref<1x32xf32, #tpu.memory_space<vmem>>, vector<1x32xf32>
    %3 = vector.shape_cast %2 : vector<1x32xf32> to vector<32xf32>
    %c0_4 = arith.constant 0 : index
    %c0_5 = arith.constant 0 : index
    %4 = vector.load %arg4[%c0_4, %c0_5] : memref<1x32xf32, #tpu.memory_space<vmem>>, vector<1x32xf32>
    %5 = vector.shape_cast %4 : vector<1x32xf32> to vector<32xf32>
    %cst = arith.constant dense<0.000000e+00> : vector<16xf32>
    %6 = vector.multi_reduction <add>, %1, %cst [1] : vector<16x32xf32> to vector<16xf32>
    %7 = vector.shape_cast %6 : vector<16xf32> to vector<16x1xf32>
    %cst_6 = arith.constant 3.200000e+01 : f32
    %8 = vector.broadcast %cst_6 : f32 to vector<16x1xf32>
    %9 = arith.divf %7, %8 : vector<16x1xf32>
    %10 = vector.broadcast %9 : vector<16x1xf32> to vector<16x32xf32>
    %11 = arith.subf %1, %10 : vector<16x32xf32>
    %12 = arith.mulf %11, %11 : vector<16x32xf32>
    %cst_7 = arith.constant dense<0.000000e+00> : vector<16xf32>
    %13 = vector.multi_reduction <add>, %12, %cst_7 [1] : vector<16x32xf32> to vector<16xf32>
    %14 = vector.shape_cast %13 : vector<16xf32> to vector<16x1xf32>
    %cst_8 = arith.constant 3.200000e+01 : f32
    %15 = vector.broadcast %cst_8 : f32 to vector<16x1xf32>
    %16 = arith.divf %14, %15 : vector<16x1xf32>
    %17 = vector.broadcast %9 : vector<16x1xf32> to vector<16x32xf32>
    %18 = arith.subf %1, %17 : vector<16x32xf32>
    %cst_9 = arith.constant 9.99999997E-7 : f32
    %19 = vector.broadcast %cst_9 : f32 to vector<16x1xf32>
    %20 = arith.addf %16, %19 : vector<16x1xf32>
    %21 = math.rsqrt %20 : vector<16x1xf32>
    %22 = vector.broadcast %21 : vector<16x1xf32> to vector<16x32xf32>
    %23 = arith.mulf %18, %22 : vector<16x32xf32>
    %24 = vector.shape_cast %3 : vector<32xf32> to vector<1x32xf32>
    %25 = vector.broadcast %24 : vector<1x32xf32> to vector<16x32xf32>
    %26 = arith.mulf %23, %25 : vector<16x32xf32>
    %27 = vector.shape_cast %5 : vector<32xf32> to vector<1x32xf32>
    %28 = vector.broadcast %27 : vector<1x32xf32> to vector<16x32xf32>
    %29 = arith.addf %26, %28 : vector<16x32xf32>
    %30 = arith.truncf %29 : vector<16x32xf32> to vector<16x32xbf16>
    %c0_10 = arith.constant 0 : index
    %c0_11 = arith.constant 0 : index
    %31 = vector.load %arg5[%c0_10, %c0_11] : memref<32x96xbf16, #tpu.memory_space<vmem>>, vector<32x96xbf16>
    %cst_12 = arith.constant dense<0.000000e+00> : vector<16x96xf32>
    %32 = tpu.matmul %30, %31, %cst_12 {dimension_numbers = #tpu.dot_dimension_numbers<[1], [0], [0], [1], [0, 0, 1, 1], [], []>} : vector<16x32xbf16>, vector<32x96xbf16>, vector<16x96xf32> -> vector<16x96xf32>
    %c0_13 = arith.constant 0 : index
    %c0_14 = arith.constant 0 : index
    %33 = vector.load %arg6[%c0_13, %c0_14] : memref<1x96xf32, #tpu.memory_space<vmem>>, vector<1x96xf32>
    %34 = vector.shape_cast %33 : vector<1x96xf32> to vector<96xf32>
    %35 = vector.shape_cast %34 : vector<96xf32> to vector<1x96xf32>
    %36 = vector.broadcast %35 : vector<1x96xf32> to vector<16x96xf32>
    %37 = arith.addf %32, %36 : vector<16x96xf32>
    %38 = arith.truncf %37 : vector<16x96xf32> to vector<16x96xbf16>
    %39 = vector.extract_strided_slice %38 {offsets = [0, 0], sizes = [16, 32], strides = [1, 1]} : vector<16x96xbf16> to vector<16x32xbf16>
    %c0_15 = arith.constant 0 : index
    %c0_16 = arith.constant 0 : index
    %c0_17 = arith.constant 0 : index
    %40 = vector.load %arg7[%c0_15, %c0_16, %c0_17] : memref<1x16x32xbf16, #tpu.memory_space<vmem>>, vector<1x16x32xbf16>
    %41 = vector.shape_cast %40 : vector<1x16x32xbf16> to vector<16x32xbf16>
    %42 = vector.shape_cast %39 : vector<16x32xbf16> to vector<1x16x32xbf16>
    tpu.vector_store %arg7[%c0_15, %c0_16, %c0_17], %42 {strides = array<i32>} : memref<1x16x32xbf16, #tpu.memory_space<vmem>>, vector<1x16x32xbf16>,
    %43 = vector.extract_strided_slice %38 {offsets = [0, 32], sizes = [16, 32], strides = [1, 1]} : vector<16x96xbf16> to vector<16x32xbf16>
    %c0_18 = arith.constant 0 : index
    %c0_19 = arith.constant 0 : index
    %c0_20 = arith.constant 0 : index
    %44 = vector.load %arg8[%c0_18, %c0_19, %c0_20] : memref<1x16x32xbf16, #tpu.memory_space<vmem>>, vector<1x16x32xbf16>
    %45 = vector.shape_cast %44 : vector<1x16x32xbf16> to vector<16x32xbf16>
    %46 = vector.shape_cast %43 : vector<16x32xbf16> to vector<1x16x32xbf16>
    tpu.vector_store %arg8[%c0_18, %c0_19, %c0_20], %46 {strides = array<i32>} : memref<1x16x32xbf16, #tpu.memory_space<vmem>>, vector<1x16x32xbf16>,
    %47 = vector.extract_strided_slice %38 {offsets = [0, 64], sizes = [16, 32], strides = [1, 1]} : vector<16x96xbf16> to vector<16x32xbf16>
    %c0_21 = arith.constant 0 : index
    %c0_22 = arith.constant 0 : index
    %c0_23 = arith.constant 0 : index
    %48 = vector.load %arg9[%c0_21, %c0_22, %c0_23] : memref<1x16x32xbf16, #tpu.memory_space<vmem>>, vector<1x16x32xbf16>
    %49 = vector.shape_cast %48 : vector<1x16x32xbf16> to vector<16x32xbf16>
    %50 = vector.shape_cast %47 : vector<16x32xbf16> to vector<1x16x32xbf16>
    tpu.vector_store %arg9[%c0_21, %c0_22, %c0_23], %50 {strides = array<i32>} : memref<1x16x32xbf16, #tpu.memory_space<vmem>>, vector<1x16x32xbf16>,
    return
  }
  func.func @transform_0(%arg0: i32, %arg1: i32) -> (i32, i32, i32) {
    %c0_i32 = arith.constant 0 : i32
    %c0_i32_0 = arith.constant 0 : i32
    return %arg0, %arg1, %c0_i32 : i32, i32, i32
  }
  func.func @transform_1(%arg0: i32, %arg1: i32) -> (i32, i32) {
    %c0_i32 = arith.constant 0 : i32
    %c0_i32_0 = arith.constant 0 : i32
    %c0_i32_1 = arith.constant 0 : i32
    return %c0_i32, %c0_i32_0 : i32, i32
  }
  func.func @transform_2(%arg0: i32, %arg1: i32) -> (i32, i32) {
    %c0_i32 = arith.constant 0 : i32
    %c0_i32_0 = arith.constant 0 : i32
    %c0_i32_1 = arith.constant 0 : i32
    return %c0_i32, %c0_i32_0 : i32, i32
  }
  func.func @transform_3(%arg0: i32, %arg1: i32) -> (i32, i32) {
    %c0_i32 = arith.constant 0 : i32
    %c0_i32_0 = arith.constant 0 : i32
    %c0_i32_1 = arith.constant 0 : i32
    return %c0_i32, %c0_i32_0 : i32, i32
  }
  func.func @transform_4(%arg0: i32, %arg1: i32) -> (i32, i32) {
    %c0_i32 = arith.constant 0 : i32
    %c0_i32_0 = arith.constant 0 : i32
    %c0_i32_1 = arith.constant 0 : i32
    return %c0_i32, %c0_i32_0 : i32, i32
  }
  func.func @transform_5(%arg0: i32, %arg1: i32) -> (i32, i32, i32) {
    %c0_i32 = arith.constant 0 : i32
    %c0_i32_0 = arith.constant 0 : i32
    return %arg0, %arg1, %c0_i32 : i32, i32, i32
  }
  func.func @transform_6(%arg0: i32, %arg1: i32) -> (i32, i32, i32) {
    %c0_i32 = arith.constant 0 : i32
    %c0_i32_0 = arith.constant 0 : i32
    return %arg0, %arg1, %c0_i32 : i32, i32, i32
  }
  func.func @transform_7(%arg0: i32, %arg1: i32) -> (i32, i32, i32) {
    %c0_i32 = arith.constant 0 : i32
    %c0_i32_0 = arith.constant 0 : i32
    return %arg0, %arg1, %c0_i32 : i32, i32, i32
  }
}

</mosaic_0001>

<llo_original>
// kernel: tpu_custom_call.1
$region0: #{tpu_custom_call.1}
  #allocation0 [shape = 'u32[]', space=smem, size = 0x4, offset = 0x4, fixed_abs, tag = 'smem constant byte address 0x4 - core index']
  #allocation1 [shape = 'u32[144,128]{1,0:T(1,128)}', space=vmem, size = 0x12000, scoped, tag = 'internal scratch']
  %s0 = inlined_call_operand.hbm [shape: f32[2,32,32], index: 0, kind: input, shape index: {}]
  %s1 = inlined_call_operand.vmem [shape: f32[1,32], index: 1, kind: input, shape index: {}]
  %s2 = inlined_call_operand.vmem [shape: f32[1,32], index: 2, kind: input, shape index: {}]
  %s3 = inlined_call_operand.hbm [shape: bf16[32,96], index: 3, kind: input, shape index: {}]
  %s4 = inlined_call_operand.vmem [shape: f32[1,96], index: 4, kind: input, shape index: {}]
  %s5 = inlined_call_operand.hbm [shape: bf16[2,32,32], index: 5, kind: output, shape index: {0}]
  %s6 = inlined_call_operand.hbm [shape: bf16[2,32,32], index: 6, kind: output, shape index: {1}]
  %s7 = inlined_call_operand.hbm [shape: bf16[2,32,32], index: 7, kind: output, shape index: {2}]
  %8 = xla_tuple %s5, %s6, %s7
  %s9 = sld [smem:[#allocation0]]
  $region77: #{tpu_custom_call.1} parent=0
    _
  %s11 = ssub.s32 1, %s9
  %s12 = scalar_select 0, %s11, %s9
  $region1: #{tpu_custom_call.1} parent=0
    #allocation2 [shape = 'u8[16384]{0}', space=vmem, size = 0x4000, scoped, tag = 'input window, operand 0']
    #allocation3 [shape = 's32[2]{0}', space=sflag, size = 0x8, scoped, tag = 'scoped memory for tpu_custom_call.1']
    #allocation4 [shape = 's32[2]{0}', space=sflag, size = 0x8, scoped, tag = 'scoped memory for tpu_custom_call.1']
    #allocation5 [shape = 'u8[8192]{0}', space=vmem, size = 0x2000, scoped, tag = 'input window, operand 3, single buffered']
    #allocation6 [shape = 's32[1]{0}', space=sflag, size = 0x4, scoped, tag = 'scoped memory for tpu_custom_call.1']
    #allocation7 [shape = 'u8[8192]{0}', space=vmem, size = 0x2000, scoped, tag = 'output window, operand 0']
    #allocation8 [shape = 'u8[8192]{0}', space=vmem, size = 0x2000, scoped, tag = 'output window, operand 1']
    #allocation9 [shape = 's32[2]{0}', space=sflag, size = 0x8, scoped, tag = 'scoped memory for tpu_custom_call.1']
    #allocation10 [shape = 'u8[8192]{0}', space=vmem, size = 0x2000, scoped, tag = 'output window, operand 2']
    %13 = vsyncpa [#allocation3], 0
    %s14 = scalar_lea.sflag [#allocation3], 1
    %15 = vsyncpa %s14, 0
    %16 = vsyncpa [#allocation6], 0
    %17 = vsyncpa [#allocation4], 0
    %s18 = scalar_lea.sflag [#allocation4], 1
    %19 = vsyncpa %s18, 0
    %20 = vsyncpa [#allocation9], 0
    %s21 = scalar_lea.sflag [#allocation9], 1
    %22 = vsyncpa %s21, 0
    loop: start=0, step=1, limit=6
    $region2: #{tpu_custom_call.1} parent=1 // loop_pre_header
      _
    $region3: #{tpu_custom_call.1} parent=1 // loop_header
      %s24 = sphi 0, %s28
      %p25 = scmp.ge.s32.totalorder %s24, 6
      %s31 = sphi 0, %s43
      %s32 = sphi 0, %s39
      %s33 = sphi 0, %s31
      %s34 = sphi 0, %s32
      %s35 = sphi 0, %s33
      %s36 = sphi 0, %s34
      %s48 = sphi 0, %s50
      %s51 = sphi 0, %s48
      %s52 = sphi 0, %s51
      %s68 = sphi 0, %s52
      %s72 = sphi 0, %s72
      %s74 = sphi 0, %s72
      %s75 = sphi 0, %s74
      %s89 = sphi 0, %s75
      %s93 = sphi 0, %s93
      %s95 = sphi 0, %s93
      %s96 = sphi 0, %s95
      %s110 = sphi 0, %s96
      %s114 = sphi 0, %s114
      %s116 = sphi 0, %s114
      %s117 = sphi 0, %s116
      %s131 = sphi 0, %s117
      %s135 = sphi 0, %s135
      %s137 = sphi 0, %s135
      %s138 = sphi 0, %s137
      %s152 = sphi 0, %s138
      %s160 = sphi 0, %s162
      %s163 = sphi 0, %s160
      %s164 = sphi 0, %s163
      %s180 = sphi 0, %s164
      %s188 = sphi 0, %s190
      %s191 = sphi 0, %s188
      %s192 = sphi 0, %s191
      %s208 = sphi 0, %s192
      %s216 = sphi 0, %s218
      %s219 = sphi 0, %s216
      %s220 = sphi 0, %s219
      %s236 = sphi 0, %s220
    $region4: #{tpu_custom_call.1} parent=1 // loop_header_branch
      %27 = sbr.rel (%p25) target = $region8
    $region5: #{tpu_custom_call.1} parent=1 // loop_body
      %s29 = ssub.s32 %s24, 1
      %s30 = ssub.s32 %s24, 2
      %s37 = sadd.s32 1, %s32
      %p38 = scmp.ge.s32.totalorder %s37, 2
      %s39 = scalar_select %p38, 0, %s37
      %s40 = sadd.s32 1, %s31
      %s41 = scalar_select %p38, %s40, %s31
      %p42 = scmp.ge.s32.totalorder %s41, 2
      %s43 = scalar_select %p42, 0, %s41
      %s44 = ssub.s32 %s31, %s43
      %s45 = ssub.s32 %s32, %s39
      %s46 = sor.u32 %s44, %s45
      %p47 = scmp.eq.s32.totalorder %s46, 0
      %s49 = sadd.s32 %s48, 1
      %s50 = scalar_select %p47, %s48, %s49
      %p53 = pneg %p47
      %p54 = scmp.eq.s32.totalorder %s24, 3
      %p55 = por %p53, %p54
      %p56 = scmp.ne.s32.totalorder %s48, %s51
      %p57 = scmp.eq.s32.totalorder %s24, 0
      %p58 = por %p56, %p57
      %p59 = scmp.ne.s32.totalorder %s48, %s51
      %p60 = scmp.eq.s32.totalorder %s29, 3
      %p61 = por %p59, %p60
      %p62 = scmp.ne.s32.totalorder %s51, %s52
      %p63 = scmp.eq.s32.totalorder %s29, 0
      %p64 = por %p62, %p63
      %p65 = scmp.ne.s32.totalorder %s51, %s52
      %p66 = scmp.eq.s32.totalorder %s30, 3
      %p67 = por %p65, %p66
      %p69 = scmp.ne.s32.totalorder %s52, %s68
      %p70 = scmp.eq.s32.totalorder %s30, 0
      %p71 = por %p69, %p70
      %s73 = sadd.s32 %s72, 1
      %p76 = scmp.eq.s32.totalorder %s24, 3
      %p77 = scmp.ne.s32.totalorder %s72, %s74
      %p78 = scmp.eq.s32.totalorder %s24, 0
      %p79 = por %p77, %p78
      %p80 = scmp.ne.s32.totalorder %s72, %s74
      %p81 = scmp.eq.s32.totalorder %s29, 3
      %p82 = por %p80, %p81
      %p83 = scmp.ne.s32.totalorder %s74, %s75
      %p84 = scmp.eq.s32.totalorder %s29, 0
      %p85 = por %p83, %p84
      %p86 = scmp.ne.s32.totalorder %s74, %s75
      %p87 = scmp.eq.s32.totalorder %s30, 3
      %p88 = por %p86, %p87
      %p90 = scmp.ne.s32.totalorder %s75, %s89
      %p91 = scmp.eq.s32.totalorder %s30, 0
      %p92 = por %p90, %p91
      %s94 = sadd.s32 %s93, 1
      %p97 = scmp.eq.s32.totalorder %s24, 3
      %p98 = scmp.ne.s32.totalorder %s93, %s95
      %p99 = scmp.eq.s32.totalorder %s24, 0
      %p100 = por %p98, %p99
      %p101 = scmp.ne.s32.totalorder %s93, %s95
      %p102 = scmp.eq.s32.totalorder %s29, 3
      %p103 = por %p101, %p102
      %p104 = scmp.ne.s32.totalorder %s95, %s96
      %p105 = scmp.eq.s32.totalorder %s29, 0
      %p106 = por %p104, %p105
      %p107 = scmp.ne.s32.totalorder %s95, %s96
      %p108 = scmp.eq.s32.totalorder %s30, 3
      %p109 = por %p107, %p108
      %p111 = scmp.ne.s32.totalorder %s96, %s110
      %p112 = scmp.eq.s32.totalorder %s30, 0
      %p113 = por %p111, %p112
      %s115 = sadd.s32 %s114, 1
      %p118 = scmp.eq.s32.totalorder %s24, 3
      %p119 = scmp.ne.s32.totalorder %s114, %s116
      %p120 = scmp.eq.s32.totalorder %s24, 0
      %p121 = por %p119, %p120
      %p122 = scmp.ne.s32.totalorder %s114, %s116
      %p123 = scmp.eq.s32.totalorder %s29, 3
      %p124 = por %p122, %p123
      %p125 = scmp.ne.s32.totalorder %s116, %s117
      %p126 = scmp.eq.s32.totalorder %s29, 0
      %p127 = por %p125, %p126
      %p128 = scmp.ne.s32.totalorder %s116, %s117
      %p129 = scmp.eq.s32.totalorder %s30, 3
      %p130 = por %p128, %p129
      %p132 = scmp.ne.s32.totalorder %s117, %s131
      %p133 = scmp.eq.s32.totalorder %s30, 0
      %p134 = por %p132, %p133
      %s136 = sadd.s32 %s135, 1
      %p139 = scmp.eq.s32.totalorder %s24, 3
      %p140 = scmp.ne.s32.totalorder %s135, %s137
      %p141 = scmp.eq.s32.totalorder %s24, 0
      %p142 = por %p140, %p141
      %p143 = scmp.ne.s32.totalorder %s135, %s137
      %p144 = scmp.eq.s32.totalorder %s29, 3
      %p145 = por %p143, %p144
      %p146 = scmp.ne.s32.totalorder %s137, %s138
      %p147 = scmp.eq.s32.totalorder %s29, 0
      %p148 = por %p146, %p147
      %p149 = scmp.ne.s32.totalorder %s137, %s138
      %p150 = scmp.eq.s32.totalorder %s30, 3
      %p151 = por %p149, %p150
      %p153 = scmp.ne.s32.totalorder %s138, %s152
      %p154 = scmp.eq.s32.totalorder %s30, 0
      %p155 = por %p153, %p154
      %s156 = ssub.s32 %s31, %s43
      %s157 = ssub.s32 %s32, %s39
      %s158 = sor.u32 %s156, %s157
      %p159 = scmp.eq.s32.totalorder %s158, 0
      %s161 = sadd.s32 %s160, 1
      %s162 = scalar_select %p159, %s160, %s161
      %p165 = pneg %p159
      %p166 = scmp.eq.s32.totalorder %s24, 3
      %p167 = por %p165, %p166
      %p168 = scmp.ne.s32.totalorder %s160, %s163
      %p169 = scmp.eq.s32.totalorder %s24, 0
      %p170 = por %p168, %p169
      %p171 = scmp.ne.s32.totalorder %s160, %s163
      %p172 = scmp.eq.s32.totalorder %s29, 3
      %p173 = por %p171, %p172
      %p174 = scmp.ne.s32.totalorder %s163, %s164
      %p175 = scmp.eq.s32.totalorder %s29, 0
      %p176 = por %p174, %p175
      %p177 = scmp.ne.s32.totalorder %s163, %s164
      %p178 = scmp.eq.s32.totalorder %s30, 3
      %p179 = por %p177, %p178
      %p181 = scmp.ne.s32.totalorder %s164, %s180
      %p182 = scmp.eq.s32.totalorder %s30, 0
      %p183 = por %p181, %p182
      %s184 = ssub.s32 %s31, %s43
      %s185 = ssub.s32 %s32, %s39
      %s186 = sor.u32 %s184, %s185
      %p187 = scmp.eq.s32.totalorder %s186, 0
      %s189 = sadd.s32 %s188, 1
      %s190 = scalar_select %p187, %s188, %s189
      %p193 = pneg %p187
      %p194 = scmp.eq.s32.totalorder %s24, 3
      %p195 = por %p193, %p194
      %p196 = scmp.ne.s32.totalorder %s188, %s191
      %p197 = scmp.eq.s32.totalorder %s24, 0
      %p198 = por %p196, %p197
      %p199 = scmp.ne.s32.totalorder %s188, %s191
      %p200 = scmp.eq.s32.totalorder %s29, 3
      %p201 = por %p199, %p200
      %p202 = scmp.ne.s32.totalorder %s191, %s192
      %p203 = scmp.eq.s32.totalorder %s29, 0
      %p204 = por %p202, %p203
      %p205 = scmp.ne.s32.totalorder %s191, %s192
      %p206 = scmp.eq.s32.totalorder %s30, 3
      %p207 = por %p205, %p206
      %p209 = scmp.ne.s32.totalorder %s192, %s208
      %p210 = scmp.eq.s32.totalorder %s30, 0
      %p211 = por %p209, %p210
      %s212 = ssub.s32 %s31, %s43
      %s213 = ssub.s32 %s32, %s39
      %s214 = sor.u32 %s212, %s213
      %p215 = scmp.eq.s32.totalorder %s214, 0
      %s217 = sadd.s32 %s216, 1
      %s218 = scalar_select %p215, %s216, %s217
      %p221 = pneg %p215
      %p222 = scmp.eq.s32.totalorder %s24, 3
      %p223 = por %p221, %p222
      %p224 = scmp.ne.s32.totalorder %s216, %s219
      %p225 = scmp.eq.s32.totalorder %s24, 0
      %p226 = por %p224, %p225
      %p227 = scmp.ne.s32.totalorder %s216, %s219
      %p228 = scmp.eq.s32.totalorder %s29, 3
      %p229 = por %p227, %p228
      %p230 = scmp.ne.s32.totalorder %s219, %s220
      %p231 = scmp.eq.s32.totalorder %s29, 0
      %p232 = por %p230, %p231
      %p233 = scmp.ne.s32.totalorder %s219, %s220
      %p234 = scmp.eq.s32.totalorder %s30, 3
      %p235 = por %p233, %p234
      %p237 = scmp.ne.s32.totalorder %s220, %s236
      %p238 = scmp.eq.s32.totalorder %s30, 0
      %p239 = por %p237, %p238
      %p240 = scmp.le.s32.totalorder 1, %s24
      %p241 = scmp.lt.s32.totalorder %s24, 5
      %p242 = pnand %p240, %p241
      %p243 = pneg %p242
      // Predicated region
      $region9: #{tpu_custom_call.1} parent=5 // pred_check
        _
      $region10: #{tpu_custom_call.1} parent=5 // pred_check_branch
        %245 = sbr.rel (%p242) target = $region12
      $region11: #{tpu_custom_call.1} parent=5 // pred_region
        %s246 = ssub.s32 %s24, 1
        // Predicated region
        $region13: #{tpu_custom_call.1} parent=11 // pred_check
          %p247 = pneg %p85
        $region14: #{tpu_custom_call.1} parent=11 // pred_check_branch
          %249 = sbr.rel (%p247) target = $region16
        $region15: #{tpu_custom_call.1} parent=11 // pred_region
          _
        $region16: #{tpu_custom_call.1} parent=11 // pred_fallthru
          _
        // Predicated region
        $region17: #{tpu_custom_call.1} parent=11 // pred_check
          %p250 = pneg %p106
        $region18: #{tpu_custom_call.1} parent=11 // pred_check_branch
          %252 = sbr.rel (%p250) target = $region20
        $region19: #{tpu_custom_call.1} parent=11 // pred_region
          _
        $region20: #{tpu_custom_call.1} parent=11 // pred_fallthru
          _
        // Predicated region
        $region21: #{tpu_custom_call.1} parent=11 // pred_check
          %p253 = pneg %p127
        $region22: #{tpu_custom_call.1} parent=11 // pred_check_branch
          %255 = sbr.rel (%p253) target = $region24
        $region23: #{tpu_custom_call.1} parent=11 // pred_region
          %s257 = ssub.s32 256, 256
          %258 = vsyncadd [#allocation6], %s257
          %s259 = sshll.u32 [#allocation5], 4
          %s260 = int_to_ptr.vmem [resolvable:$true] %s259
          %265 = dma.hbm_to_vmem [thread:$0]  %s3, 256, %s260, [#allocation6], 64, 64, 4
        $region24: #{tpu_custom_call.1} parent=11 // pred_fallthru
          _
        // Predicated region
        $region25: #{tpu_custom_call.1} parent=11 // pred_check
          %p266 = pneg %p148
        $region26: #{tpu_custom_call.1} parent=11 // pred_check_branch
          %268 = sbr.rel (%p266) target = $region28
        $region27: #{tpu_custom_call.1} parent=11 // pred_region
          _
        $region28: #{tpu_custom_call.1} parent=11 // pred_fallthru
          _
      $region12: #{tpu_custom_call.1} parent=5 // pred_fallthru
        _
      %p269 = scmp.lt.s32.totalorder %s24, 4
      // Predicated region
      $region29: #{tpu_custom_call.1} parent=5 // pred_check
        %p270 = pneg %p269
      $region30: #{tpu_custom_call.1} parent=5 // pred_check_branch
        %272 = sbr.rel (%p270) target = $region32
      $region31: #{tpu_custom_call.1} parent=5 // pred_region
        // Predicated region
        $region33: #{tpu_custom_call.1} parent=31 // pred_check
          %p273 = pneg %p58
        $region34: #{tpu_custom_call.1} parent=31 // pred_check_branch
          %275 = sbr.rel (%p273) target = $region36
        $region35: #{tpu_custom_call.1} parent=31 // pred_region
          %s276 = sand.u32 %s48, 1
          %s277 = scalar_lea.sflag [#allocation3], %s276
          %s278 = sand.u32 %s48, 1
          %s279 = smul.addr %s278, 16
          %s280 = scalar_lea.vmem [#allocation2], %s279
          %s281 = smul.u32 2, %s32
          %s283 = ssub.s32 256, 256
          %284 = vsyncadd %s277, %s283
          %s285 = smul.addr %s31, 4
          %s286 = sadd.s32 %s281, %s285
          %s287 = smul.addr %s286, 128
          %s288 = scalar_lea.hbm %s0, %s287
          %s289 = sshll.u32 %s280, 4
          %s290 = int_to_ptr.vmem [resolvable:$true] %s289
          %295 = dma.hbm_to_vmem [thread:$0]  %s288, 256, %s290, %s277, 128, 128, 8
        $region36: #{tpu_custom_call.1} parent=31 // pred_fallthru
          _
      $region32: #{tpu_custom_call.1} parent=5 // pred_fallthru
        _
      %p296 = scmp.le.s32.totalorder 1, %s24
      %p297 = scmp.lt.s32.totalorder %s24, 5
      %p298 = pnand %p296, %p297
      %p299 = pneg %p298
      // Predicated region
      $region37: #{tpu_custom_call.1} parent=5 // pred_check
        _
      $region38: #{tpu_custom_call.1} parent=5 // pred_check_branch
        %301 = sbr.rel (%p298) target = $region40
      $region39: #{tpu_custom_call.1} parent=5 // pred_region
        %s302 = ssub.s32 %s24, 1
        %s303 = sand.u32 %s51, 1
        %s304 = scalar_lea.sflag [#allocation3], %s303
        %s305 = sand.u32 %s51, 1
        %s306 = smul.addr %s305, 16
        %s307 = scalar_lea.vmem [#allocation2], %s306
        // Predicated region
        $region41: #{tpu_custom_call.1} parent=39 // pred_check
          %p308 = pneg %p64
        $region42: #{tpu_custom_call.1} parent=39 // pred_check_branch
          %310 = sbr.rel (%p308) target = $region44
        $region43: #{tpu_custom_call.1} parent=39 // pred_region
          %311 = dma.done %s304, 256
        $region44: #{tpu_custom_call.1} parent=39 // pred_fallthru
          _
        // Predicated region
        $region45: #{tpu_custom_call.1} parent=39 // pred_check
          %p312 = pneg %p127
        $region46: #{tpu_custom_call.1} parent=39 // pred_check_branch
          %314 = sbr.rel (%p312) target = $region48
        $region47: #{tpu_custom_call.1} parent=39 // pred_region
          %315 = dma.done [#allocation6], 256
        $region48: #{tpu_custom_call.1} parent=39 // pred_fallthru
          _
        %s316 = sand.u32 %s51, 1
        %s317 = scalar_lea.sflag [#allocation3], %s316
        %s318 = sand.u32 %s51, 1
        %s319 = smul.addr %s318, 16
        %s320 = scalar_lea.vmem [#allocation2], %s319
        %p321 = pneg %p64
        %p322 = pneg %p61
        %p323 = pneg %p85
        %p324 = pneg %p82
        %p325 = pneg %p106
        %p326 = pneg %p103
        %p327 = pneg %p127
        %p328 = pneg %p124
        %p329 = pneg %p148
        %p330 = pneg %p145
        %p331 = pneg %p176
        %p332 = pneg %p173
        %s333 = sand.u32 %s163, 1
        %s334 = scalar_lea.sflag [#allocation4], %s333
        %s335 = sand.u32 %s163, 1
        %s336 = smul.addr %s335, 8
        %s337 = scalar_lea.vmem [#allocation7], %s336
        %p338 = pneg %p204
        %p339 = pneg %p201
        %s340 = sand.u32 %s29, 1
        %s341 = scalar_lea.sflag [#allocation9], %s340
        %s342 = sand.u32 %s191, 1
        %s343 = smul.addr %s342, 8
        %s344 = scalar_lea.vmem [#allocation8], %s343
        %p345 = pneg %p232
        %p346 = pneg %p229
        %s347 = sand.u32 %s29, 1
        %s348 = scalar_lea.sflag [#allocation9], %s347
        %s349 = sand.u32 %s219, 1
        %s350 = smul.addr %s349, 8
        %s351 = scalar_lea.vmem [#allocation10], %s350
        %s352 = smul.u32 2, %s34
        %s353 = smul.u32 2, %s34
        %s354 = smul.u32 2, %s34
        %s355 = smul.u32 2, %s34
        %v357 = vld [vmem:[%s307] sm:$0xff]
        %v358 = vld [vmem:[%s307 + $0x8] sm:$0xff]
        %v359 = vld [vmem:[%s1] sm:$0x1]
        %v360 = vld [vmem:[%s2] sm:$0x1]
        %vm361 = vcmask 261120
        %v362 = vsel %vm361, %v357, 0.0
        %363 = vadd.xlane.f32.xlu0 %v362
        %v364 = vpop.xlane.xlu0 %363
        %v365 = vsel %vm361, %v358, 0.0
        %366 = vadd.xlane.f32.xlu0 %v365
        %v367 = vpop.xlane.xlu0 %366
        %v368 = vrcp.pop 32.0
        %v369 = vmul.f32 %v364, %v368
        %v370 = vmul.f32 %v367, %v368
        %v371 = vsub.f32 %v357, %v369
        %v372 = vsub.f32 %v358, %v370
        %v373 = vmul.f32 %v371, %v371
        %v374 = vmul.f32 %v372, %v372
        %v375 = vsel %vm361, %v373, 0.0
        %376 = vadd.xlane.f32.xlu0 %v375
        %v377 = vpop.xlane.xlu0 %376
        %v378 = vsel %vm361, %v374, 0.0
        %379 = vadd.xlane.f32.xlu0 %v378
        %v380 = vpop.xlane.xlu0 %379
        %v381 = vmul.f32 %v377, %v368
        %v382 = vmul.f32 %v380, %v368
        %v383 = vadd.f32 %v381, 1e-06
        %v384 = vadd.f32 %v382, 1e-06
        %v385 = vrsqrt.pop %v383
        %v386 = vrsqrt.pop %v384
        %v387 = vmul.f32 %v371, %v385
        %v388 = vmul.f32 %v372, %v386
        %v390 = vlaneseq
        %v391 = vshrl.u32 %v390, 7
        %v392 = vsub.s32 0, %v391
        %v393 = vrot.slane %v359, %v392
        %v395 = vmul.f32 %v387, %v393
        %v396 = vmul.f32 %v388, %v393
        %v398 = vlaneseq
        %v399 = vshrl.u32 %v398, 7
        %v400 = vsub.s32 0, %v399
        %v401 = vrot.slane %v360, %v400
        %v403 = vadd.f32 %v395, %v401
        %v404 = vadd.f32 %v396, %v401
        %v405 = vpack.c.bf16 %v404, %v403
        %v406 = vld [vmem:[#allocation5] sm:$0xf]
        %v407 = vld [vmem:[#allocation5 + $0x4] sm:$0xf]
        %v408 = vld [vmem:[#allocation5 + $0x8] sm:$0xf]
        %v409 = vld [vmem:[#allocation5 + $0xc] sm:$0xf]
        %v410 = vld [vmem:[%s4] sm:$0x1]
        %v412 = vlaneseq
        %v413 = vshrl.u32 %v412, 7
        %v414 = vsub.s32 0, %v413
        %v415 = vrot.slane %v410, %v414
        %v421 = vunpack.c.l.b16 %v406
        %v422 = vunpack.c.l.b16 %v407
        %v423 = vunpack.c.l.b16 %v408
        %v424 = vunpack.c.l.b16 %v409
        %v425 = vpack.c.b16 %v422, %v421
        %v426 = vpack.c.b16 %v424, %v423
        %v430 = vsel %vm361, %v405, 0
        %432 = vmatprep.subr.bf16.mxu0 0
        %433 = vmatpush1.bf16.msra.mxu0 %v425
        %434 = vmatprep.subr.bf16.mxu0 0
        %435 = vmatpush1.bf16.msra.mxu0 %v426
        %436 = vmatprep.subr.bf16.mxu0 0
        %437 = vmatpush1.bf16.msra.mxu0 0
        %438 = vmatprep.subr.bf16.mxu0 0
        %439 = vmatpush1.bf16.msra.mxu0 0
        %440 = vmatprep.subr.bf16.mxu0 0
        %441 = vmatpush1.bf16.msra.mxu0 0
        %442 = vmatprep.subr.bf16.mxu0 0
        %443 = vmatpush1.bf16.msra.mxu0 0
        %444 = vmatprep.subr.bf16.mxu0 0
        %445 = vmatpush1.bf16.msra.mxu0 0
        %446 = vmatprep.subr.bf16.mxu0 0
        %447 = vmatpush1.bf16.msra.mxu0 0
        %448 = vmatprep.subr.bf16.mxu0 0
        %449 = vmatpush1.bf16.msra.mxu0 0
        %450 = vmatprep.subr.bf16.mxu0 0
        %451 = vmatpush1.bf16.msra.mxu0 0
        %452 = vmatprep.subr.bf16.mxu0 0
        %453 = vmatpush1.bf16.msra.mxu0 0
        %454 = vmatprep.subr.bf16.mxu0 0
        %455 = vmatpush1.bf16.msra.mxu0 0
        %456 = vmatprep.subr.bf16.mxu0 0
        %457 = vmatpush1.bf16.msra.mxu0 0
        %458 = vmatprep.subr.bf16.mxu0 0
        %459 = vmatpush1.bf16.msra.mxu0 0
        %460 = vmatprep.subr.bf16.mxu0 0
        %461 = vmatpush1.bf16.msra.mxu0 0
        %462 = vmatprep.subr.bf16.mxu0 0
        %463 = vmatpush1.bf16.msra.mxu0 0
        %464 = vmatprep.mubr.bf16.mxu0 0
        %465 = vmatmul.mubr.bf16.gmra.mrb[0].mxu0 %v430
        %v466 = vpop.f32.mrb[0].mxu0
        %v467 = vadd.f32 %v415, %v466
        %v468 = vpop.f32.mrb[0].mxu0
        %v469 = vpop.f32.mrb[0].mxu0
        %v470 = vadd.f32 %v415, %v469
        %v471 = vpop.f32.mrb[0].mxu0
        %472 = vdwg.mxu0
        %v473 = vpack.c.bf16 %v470, %v467
        %v475 = vunpack.c.l.b16 %v473
        %v476 = vunpack.c.h.b16 %v473
        %v477 = vpack.c.b16 %v475, %v475
        %v478 = vpack.c.b16 %v476, %v476
        %vm481 = vcmask 257024
        %482 = vst.msk [vmem:[%s337] sm:$0xf] %vm481, %v477
        %483 = vst.msk [vmem:[%s337 + $0x4] sm:$0xf] %vm481, %v478
        %484 = vrot.lane.b32.xlu0 %v477, 96
        %v485 = vpop.permute.xlu0 %484
        %486 = vrot.lane.b32.xlu0 %v478, 96
        %v487 = vpop.permute.xlu0 %486
        %490 = vst.msk [vmem:[%s344] sm:$0xf] %vm481, %v485
        %491 = vst.msk [vmem:[%s344 + $0x4] sm:$0xf] %vm481, %v487
        %492 = vrot.lane.b32.xlu0 %v477, 64
        %v493 = vpop.permute.xlu0 %492
        %494 = vrot.lane.b32.xlu0 %v478, 64
        %v495 = vpop.permute.xlu0 %494
        %498 = vst.msk [vmem:[%s351] sm:$0xf] %vm481, %v493
        %499 = vst.msk [vmem:[%s351 + $0x4] sm:$0xf] %vm481, %v495
        %s500 = sand.u32 %s163, 1
        %s501 = scalar_lea.sflag [#allocation4], %s500
        %s502 = sand.u32 %s163, 1
        %s503 = smul.addr %s502, 8
        %s504 = scalar_lea.vmem [#allocation7], %s503
        %s505 = sand.u32 %s29, 1
        %s506 = scalar_lea.sflag [#allocation9], %s505
        %s507 = sand.u32 %s191, 1
        %s508 = smul.addr %s507, 8
        %s509 = scalar_lea.vmem [#allocation8], %s508
        %s510 = sand.u32 %s29, 1
        %s511 = scalar_lea.sflag [#allocation9], %s510
        %s512 = sand.u32 %s219, 1
        %s513 = smul.addr %s512, 8
        %s514 = scalar_lea.vmem [#allocation10], %s513
        // Predicated region
        $region49: #{tpu_custom_call.1} parent=39 // pred_check
          %p515 = pneg %p173
        $region50: #{tpu_custom_call.1} parent=39 // pred_check_branch
          %517 = sbr.rel (%p515) target = $region52
        $region51: #{tpu_custom_call.1} parent=39 // pred_region
          %s518 = smul.u32 2, %s34
          %s520 = ssub.s32 128, 128
          %521 = vsyncadd %s501, %s520
          %s522 = smul.addr %s33, 4
          %s523 = sadd.s32 %s518, %s522
          %s524 = smul.addr %s523, 64
          %s525 = scalar_lea.hbm %s5, %s524
          %s526 = sshll.u32 %s504, 4
          %s527 = int_to_ptr.vmem [resolvable:$true] %s526
          %532 = dma.vmem_to_hbm [thread:$0]  %s527, 128, %s525, %s501, 64, 64, 4
        $region52: #{tpu_custom_call.1} parent=39 // pred_fallthru
          _
        // Predicated region
        $region53: #{tpu_custom_call.1} parent=39 // pred_check
          %p533 = pneg %p201
        $region54: #{tpu_custom_call.1} parent=39 // pred_check_branch
          %535 = sbr.rel (%p533) target = $region56
        $region55: #{tpu_custom_call.1} parent=39 // pred_region
          %s536 = smul.u32 2, %s34
          %s538 = ssub.s32 128, 128
          %539 = vsyncadd %s506, %s538
          %s540 = smul.addr %s33, 4
          %s541 = sadd.s32 %s536, %s540
          %s542 = smul.addr %s541, 64
          %s543 = scalar_lea.hbm %s6, %s542
          %s544 = sshll.u32 %s509, 4
          %s545 = int_to_ptr.vmem [resolvable:$true] %s544
          %550 = dma.vmem_to_hbm [thread:$0]  %s545, 128, %s543, %s506, 64, 64, 4
        $region56: #{tpu_custom_call.1} parent=39 // pred_fallthru
          _
        // Predicated region
        $region57: #{tpu_custom_call.1} parent=39 // pred_check
          %p551 = pneg %p229
        $region58: #{tpu_custom_call.1} parent=39 // pred_check_branch
          %553 = sbr.rel (%p551) target = $region60
        $region59: #{tpu_custom_call.1} parent=39 // pred_region
          %s554 = smul.u32 2, %s34
          %s556 = ssub.s32 128, 128
          %557 = vsyncadd %s511, %s556
          %s558 = smul.addr %s33, 4
          %s559 = sadd.s32 %s554, %s558
          %s560 = smul.addr %s559, 64
          %s561 = scalar_lea.hbm %s7, %s560
          %s562 = sshll.u32 %s514, 4
          %s563 = int_to_ptr.vmem [resolvable:$true] %s562
          %568 = dma.vmem_to_hbm [thread:$0]  %s563, 128, %s561, %s511, 64, 64, 4
        $region60: #{tpu_custom_call.1} parent=39 // pred_fallthru
          _
      $region40: #{tpu_custom_call.1} parent=5 // pred_fallthru
        _
      %p569 = scmp.le.s32.totalorder 2, %s24
      // Predicated region
      $region61: #{tpu_custom_call.1} parent=5 // pred_check
        %p570 = pneg %p569
      $region62: #{tpu_custom_call.1} parent=5 // pred_check_branch
        %572 = sbr.rel (%p570) target = $region64
      $region63: #{tpu_custom_call.1} parent=5 // pred_region
        %s573 = ssub.s32 %s24, 2
        // Predicated region
        $region65: #{tpu_custom_call.1} parent=63 // pred_check
          %p574 = pneg %p179
        $region66: #{tpu_custom_call.1} parent=63 // pred_check_branch
          %576 = sbr.rel (%p574) target = $region68
        $region67: #{tpu_custom_call.1} parent=63 // pred_region
          %s577 = sand.u32 %s164, 1
          %s578 = scalar_lea.sflag [#allocation4], %s577
          %s579 = sand.u32 %s164, 1
          %s580 = smul.addr %s579, 8
          %s581 = scalar_lea.vmem [#allocation7], %s580
          %582 = dma.done %s578, 128
        $region68: #{tpu_custom_call.1} parent=63 // pred_fallthru
          _
        // Predicated region
        $region69: #{tpu_custom_call.1} parent=63 // pred_check
          %p583 = pneg %p207
        $region70: #{tpu_custom_call.1} parent=63 // pred_check_branch
          %585 = sbr.rel (%p583) target = $region72
        $region71: #{tpu_custom_call.1} parent=63 // pred_region
          %s586 = sand.u32 %s30, 1
          %s587 = scalar_lea.sflag [#allocation9], %s586
          %s588 = sand.u32 %s192, 1
          %s589 = smul.addr %s588, 8
          %s590 = scalar_lea.vmem [#allocation8], %s589
          %591 = dma.done %s587, 128
        $region72: #{tpu_custom_call.1} parent=63 // pred_fallthru
          _
        // Predicated region
        $region73: #{tpu_custom_call.1} parent=63 // pred_check
          %p592 = pneg %p235
        $region74: #{tpu_custom_call.1} parent=63 // pred_check_branch
          %594 = sbr.rel (%p592) target = $region76
        $region75: #{tpu_custom_call.1} parent=63 // pred_region
          %s595 = sand.u32 %s30, 1
          %s596 = scalar_lea.sflag [#allocation9], %s595
          %s597 = sand.u32 %s220, 1
          %s598 = smul.addr %s597, 8
          %s599 = scalar_lea.vmem [#allocation10], %s598
          %600 = dma.done %s596, 128
        $region76: #{tpu_custom_call.1} parent=63 // pred_fallthru
          _
      $region64: #{tpu_custom_call.1} parent=5 // pred_fallthru
        _
    $region6: #{tpu_custom_call.1} parent=1 // loop_footer
      %s28 = sadd.s32 1, %s24
    $region7: #{tpu_custom_call.1} parent=1 // loop_footer_branch
      %23 = sbr.rel target = $region3
    $region8: #{tpu_custom_call.1} parent=1 // loop_exit
      _
    %601 = vsyncpa [#allocation3], 1
    %s602 = scalar_lea.sflag [#allocation3], 1
    %603 = vsyncpa %s602, 1
    %604 = vsyncpa [#allocation6], 1
    %605 = vsyncpa [#allocation4], 1
    %s606 = scalar_lea.sflag [#allocation4], 1
    %607 = vsyncpa %s606, 1
    %608 = vsyncpa [#allocation9], 1
    %s609 = scalar_lea.sflag [#allocation9], 1
    %610 = vsyncpa %s609, 1

// kernel: tpu_custom_call.1
$region0: #{tpu_custom_call.1}
  #allocation0 [shape = 'u32[]', space=smem, size = 0x4, offset = 0x4, fixed_abs, tag = 'smem constant byte address 0x4 - core index']
  #allocation1 [shape = 'u32[144,128]{1,0:T(1,128)}', space=vmem, size = 0x12000, scoped, tag = 'internal scratch']
  %s0 = inlined_call_operand.hbm [shape: f32[2,32,32], index: 0, kind: input, shape index: {}]
  %s1 = inlined_call_operand.vmem [shape: f32[1,32], index: 1, kind: input, shape index: {}]
  %s2 = inlined_call_operand.vmem [shape: f32[1,32], index: 2, kind: input, shape index: {}]
  %s3 = inlined_call_operand.hbm [shape: bf16[32,96], index: 3, kind: input, shape index: {}]
  %s4 = inlined_call_operand.vmem [shape: f32[1,96], index: 4, kind: input, shape index: {}]
  %s5 = inlined_call_operand.hbm [shape: bf16[2,32,32], index: 5, kind: output, shape index: {0}]
  %s6 = inlined_call_operand.hbm [shape: bf16[2,32,32], index: 6, kind: output, shape index: {1}]
  %s7 = inlined_call_operand.hbm [shape: bf16[2,32,32], index: 7, kind: output, shape index: {2}]
  %8 = xla_tuple %s5, %s6, %s7
  %s9 = sld [smem:[#allocation0]]
  $region77: #{tpu_custom_call.1} parent=0
    _
  %s11 = ssub.s32 1, %s9
  %s12 = scalar_select 0, %s11, %s9
  $region1: #{tpu_custom_call.1} parent=0
    #allocation2 [shape = 'u8[16384]{0}', space=vmem, size = 0x4000, scoped, tag = 'input window, operand 0']
    #allocation3 [shape = 's32[2]{0}', space=sflag, size = 0x8, scoped, tag = 'scoped memory for tpu_custom_call.1']
    #allocation4 [shape = 's32[2]{0}', space=sflag, size = 0x8, scoped, tag = 'scoped memory for tpu_custom_call.1']
    #allocation5 [shape = 'u8[8192]{0}', space=vmem, size = 0x2000, scoped, tag = 'input window, operand 3, single buffered']
    #allocation6 [shape = 's32[1]{0}', space=sflag, size = 0x4, scoped, tag = 'scoped memory for tpu_custom_call.1']
    #allocation7 [shape = 'u8[8192]{0}', space=vmem, size = 0x2000, scoped, tag = 'output window, operand 0']
    #allocation8 [shape = 'u8[8192]{0}', space=vmem, size = 0x2000, scoped, tag = 'output window, operand 1']
    #allocation9 [shape = 's32[2]{0}', space=sflag, size = 0x8, scoped, tag = 'scoped memory for tpu_custom_call.1']
    #allocation10 [shape = 'u8[8192]{0}', space=vmem, size = 0x2000, scoped, tag = 'output window, operand 2']
    %13 = vsyncpa [#allocation3], 0
    %s14 = scalar_lea.sflag [#allocation3], 1
    %15 = vsyncpa %s14, 0
    %16 = vsyncpa [#allocation6], 0
    %17 = vsyncpa [#allocation4], 0
    %s18 = scalar_lea.sflag [#allocation4], 1
    %19 = vsyncpa %s18, 0
    %20 = vsyncpa [#allocation9], 0
    %s21 = scalar_lea.sflag [#allocation9], 1
    %22 = vsyncpa %s21, 0
    loop: start=0, step=1, limit=6
    $region2: #{tpu_custom_call.1} parent=1 // loop_pre_header
      _
    $region3: #{tpu_custom_call.1} parent=1 // loop_header
      %s24 = sphi 0, %s28
      %p25 = scmp.ge.s32.totalorder %s24, 6
      %s31 = sphi 0, %s43
      %s32 = sphi 0, %s39
      %s33 = sphi 0, %s31
      %s34 = sphi 0, %s32
      %s35 = sphi 0, %s33
      %s36 = sphi 0, %s34
      %s48 = sphi 0, %s50
      %s51 = sphi 0, %s48
      %s52 = sphi 0, %s51
      %s68 = sphi 0, %s52
      %s72 = sphi 0, %s72
      %s74 = sphi 0, %s72
      %s75 = sphi 0, %s74
      %s89 = sphi 0, %s75
      %s93 = sphi 0, %s93
      %s95 = sphi 0, %s93
      %s96 = sphi 0, %s95
      %s110 = sphi 0, %s96
      %s114 = sphi 0, %s114
      %s116 = sphi 0, %s114
      %s117 = sphi 0, %s116
      %s131 = sphi 0, %s117
      %s135 = sphi 0, %s135
      %s137 = sphi 0, %s135
      %s138 = sphi 0, %s137
      %s152 = sphi 0, %s138
      %s160 = sphi 0, %s162
      %s163 = sphi 0, %s160
      %s164 = sphi 0, %s163
      %s180 = sphi 0, %s164
      %s188 = sphi 0, %s190
      %s191 = sphi 0, %s188
      %s192 = sphi 0, %s191
      %s208 = sphi 0, %s192
      %s216 = sphi 0, %s218
      %s219 = sphi 0, %s216
      %s220 = sphi 0, %s219
      %s236 = sphi 0, %s220
    $region4: #{tpu_custom_call.1} parent=1 // loop_header_branch
      %27 = sbr.rel (%p25) target = $region8
    $region5: #{tpu_custom_call.1} parent=1 // loop_body
      %s29 = ssub.s32 %s24, 1
      %s30 = ssub.s32 %s24, 2
      %s37 = sadd.s32 1, %s32
      %p38 = scmp.ge.s32.totalorder %s37, 2
      %s39 = scalar_select %p38, 0, %s37
      %s40 = sadd.s32 1, %s31
      %s41 = scalar_select %p38, %s40, %s31
      %p42 = scmp.ge.s32.totalorder %s41, 2
      %s43 = scalar_select %p42, 0, %s41
      %s44 = ssub.s32 %s31, %s43
      %s45 = ssub.s32 %s32, %s39
      %s46 = sor.u32 %s44, %s45
      %p47 = scmp.eq.s32.totalorder %s46, 0
      %s49 = sadd.s32 %s48, 1
      %s50 = scalar_select %p47, %s48, %s49
      %p53 = pneg %p47
      %p54 = scmp.eq.s32.totalorder %s24, 3
      %p55 = por %p53, %p54
      %p56 = scmp.ne.s32.totalorder %s48, %s51
      %p57 = scmp.eq.s32.totalorder %s24, 0
      %p58 = por %p56, %p57
      %p59 = scmp.ne.s32.totalorder %s48, %s51
      %p60 = scmp.eq.s32.totalorder %s29, 3
      %p61 = por %p59, %p60
      %p62 = scmp.ne.s32.totalorder %s51, %s52
      %p63 = scmp.eq.s32.totalorder %s29, 0
      %p64 = por %p62, %p63
      %p65 = scmp.ne.s32.totalorder %s51, %s52
      %p66 = scmp.eq.s32.totalorder %s30, 3
      %p67 = por %p65, %p66
      %p69 = scmp.ne.s32.totalorder %s52, %s68
      %p70 = scmp.eq.s32.totalorder %s30, 0
      %p71 = por %p69, %p70
      %s73 = sadd.s32 %s72, 1
      %p76 = scmp.eq.s32.totalorder %s24, 3
      %p77 = scmp.ne.s32.totalorder %s72, %s74
      %p78 = scmp.eq.s32.totalorder %s24, 0
      %p79 = por %p77, %p78
      %p80 = scmp.ne.s32.totalorder %s72, %s74
      %p81 = scmp.eq.s32.totalorder %s29, 3
      %p82 = por %p80, %p81
      %p83 = scmp.ne.s32.totalorder %s74, %s75
      %p84 = scmp.eq.s32.totalorder %s29, 0
      %p85 = por %p83, %p84
      %p86 = scmp.ne.s32.totalorder %s74, %s75
      %p87 = scmp.eq.s32.totalorder %s30, 3
      %p88 = por %p86, %p87
      %p90 = scmp.ne.s32.totalorder %s75, %s89
      %p91 = scmp.eq.s32.totalorder %s30, 0
      %p92 = por %p90, %p91
      %s94 = sadd.s32 %s93, 1
      %p97 = scmp.eq.s32.totalorder %s24, 3
      %p98 = scmp.ne.s32.totalorder %s93, %s95
      %p99 = scmp.eq.s32.totalorder %s24, 0
      %p100 = por %p98, %p99
      %p101 = scmp.ne.s32.totalorder %s93, %s95
      %p102 = scmp.eq.s32.totalorder %s29, 3
      %p103 = por %p101, %p102
      %p104 = scmp.ne.s32.totalorder %s95, %s96
      %p105 = scmp.eq.s32.totalorder %s29, 0
      %p106 = por %p104, %p105
      %p107 = scmp.ne.s32.totalorder %s95, %s96
      %p108 = scmp.eq.s32.totalorder %s30, 3
      %p109 = por %p107, %p108
      %p111 = scmp.ne.s32.totalorder %s96, %s110
      %p112 = scmp.eq.s32.totalorder %s30, 0
      %p113 = por %p111, %p112
      %s115 = sadd.s32 %s114, 1
      %p118 = scmp.eq.s32.totalorder %s24, 3
      %p119 = scmp.ne.s32.totalorder %s114, %s116
      %p120 = scmp.eq.s32.totalorder %s24, 0
      %p121 = por %p119, %p120
      %p122 = scmp.ne.s32.totalorder %s114, %s116
      %p123 = scmp.eq.s32.totalorder %s29, 3
      %p124 = por %p122, %p123
      %p125 = scmp.ne.s32.totalorder %s116, %s117
      %p126 = scmp.eq.s32.totalorder %s29, 0
      %p127 = por %p125, %p126
      %p128 = scmp.ne.s32.totalorder %s116, %s117
      %p129 = scmp.eq.s32.totalorder %s30, 3
      %p130 = por %p128, %p129
      %p132 = scmp.ne.s32.totalorder %s117, %s131
      %p133 = scmp.eq.s32.totalorder %s30, 0
      %p134 = por %p132, %p133
      %s136 = sadd.s32 %s135, 1
      %p139 = scmp.eq.s32.totalorder %s24, 3
      %p140 = scmp.ne.s32.totalorder %s135, %s137
      %p141 = scmp.eq.s32.totalorder %s24, 0
      %p142 = por %p140, %p141
      %p143 = scmp.ne.s32.totalorder %s135, %s137
      %p144 = scmp.eq.s32.totalorder %s29, 3
      %p145 = por %p143, %p144
      %p146 = scmp.ne.s32.totalorder %s137, %s138
      %p147 = scmp.eq.s32.totalorder %s29, 0
      %p148 = por %p146, %p147
      %p149 = scmp.ne.s32.totalorder %s137, %s138
      %p150 = scmp.eq.s32.totalorder %s30, 3
      %p151 = por %p149, %p150
      %p153 = scmp.ne.s32.totalorder %s138, %s152
      %p154 = scmp.eq.s32.totalorder %s30, 0
      %p155 = por %p153, %p154
      %s156 = ssub.s32 %s31, %s43
      %s157 = ssub.s32 %s32, %s39
      %s158 = sor.u32 %s156, %s157
      %p159 = scmp.eq.s32.totalorder %s158, 0
      %s161 = sadd.s32 %s160, 1
      %s162 = scalar_select %p159, %s160, %s161
      %p165 = pneg %p159
      %p166 = scmp.eq.s32.totalorder %s24, 3
      %p167 = por %p165, %p166
      %p168 = scmp.ne.s32.totalorder %s160, %s163
      %p169 = scmp.eq.s32.totalorder %s24, 0
      %p170 = por %p168, %p169
      %p171 = scmp.ne.s32.totalorder %s160, %s163
      %p172 = scmp.eq.s32.totalorder %s29, 3
      %p173 = por %p171, %p172
      %p174 = scmp.ne.s32.totalorder %s163, %s164
      %p175 = scmp.eq.s32.totalorder %s29, 0
      %p176 = por %p174, %p175
      %p177 = scmp.ne.s32.totalorder %s163, %s164
      %p178 = scmp.eq.s32.totalorder %s30, 3
      %p179 = por %p177, %p178
      %p181 = scmp.ne.s32.totalorder %s164, %s180
      %p182 = scmp.eq.s32.totalorder %s30, 0
      %p183 = por %p181, %p182
      %s184 = ssub.s32 %s31, %s43
      %s185 = ssub.s32 %s32, %s39
      %s186 = sor.u32 %s184, %s185
      %p187 = scmp.eq.s32.totalorder %s186, 0
      %s189 = sadd.s32 %s188, 1
      %s190 = scalar_select %p187, %s188, %s189
      %p193 = pneg %p187
      %p194 = scmp.eq.s32.totalorder %s24, 3
      %p195 = por %p193, %p194
      %p196 = scmp.ne.s32.totalorder %s188, %s191
      %p197 = scmp.eq.s32.totalorder %s24, 0
      %p198 = por %p196, %p197
      %p199 = scmp.ne.s32.totalorder %s188, %s191
      %p200 = scmp.eq.s32.totalorder %s29, 3
      %p201 = por %p199, %p200
      %p202 = scmp.ne.s32.totalorder %s191, %s192
      %p203 = scmp.eq.s32.totalorder %s29, 0
      %p204 = por %p202, %p203
      %p205 = scmp.ne.s32.totalorder %s191, %s192
      %p206 = scmp.eq.s32.totalorder %s30, 3
      %p207 = por %p205, %p206
      %p209 = scmp.ne.s32.totalorder %s192, %s208
      %p210 = scmp.eq.s32.totalorder %s30, 0
      %p211 = por %p209, %p210
      %s212 = ssub.s32 %s31, %s43
      %s213 = ssub.s32 %s32, %s39
      %s214 = sor.u32 %s212, %s213
      %p215 = scmp.eq.s32.totalorder %s214, 0
      %s217 = sadd.s32 %s216, 1
      %s218 = scalar_select %p215, %s216, %s217
      %p221 = pneg %p215
      %p222 = scmp.eq.s32.totalorder %s24, 3
      %p223 = por %p221, %p222
      %p224 = scmp.ne.s32.totalorder %s216, %s219
      %p225 = scmp.eq.s32.totalorder %s24, 0
      %p226 = por %p224, %p225
      %p227 = scmp.ne.s32.totalorder %s216, %s219
      %p228 = scmp.eq.s32.totalorder %s29, 3
      %p229 = por %p227, %p228
      %p230 = scmp.ne.s32.totalorder %s219, %s220
      %p231 = scmp.eq.s32.totalorder %s29, 0
      %p232 = por %p230, %p231
      %p233 = scmp.ne.s32.totalorder %s219, %s220
      %p234 = scmp.eq.s32.totalorder %s30, 3
      %p235 = por %p233, %p234
      %p237 = scmp.ne.s32.totalorder %s220, %s236
      %p238 = scmp.eq.s32.totalorder %s30, 0
      %p239 = por %p237, %p238
      %p240 = scmp.le.s32.totalorder 1, %s24
      %p241 = scmp.lt.s32.totalorder %s24, 5
      %p242 = pnand %p240, %p241
      %p243 = pneg %p242
      // Predicated region
      $region9: #{tpu_custom_call.1} parent=5 // pred_check
        _
      $region10: #{tpu_custom_call.1} parent=5 // pred_check_branch
        %245 = sbr.rel (%p242) target = $region12
      $region11: #{tpu_custom_call.1} parent=5 // pred_region
        %s246 = ssub.s32 %s24, 1
        // Predicated region
        $region13: #{tpu_custom_call.1} parent=11 // pred_check
          %p247 = pneg %p85
        $region14: #{tpu_custom_call.1} parent=11 // pred_check_branch
          %249 = sbr.rel (%p247) target = $region16
        $region15: #{tpu_custom_call.1} parent=11 // pred_region
          _
        $region16: #{tpu_custom_call.1} parent=11 // pred_fallthru
          _
        // Predicated region
        $region17: #{tpu_custom_call.1} parent=11 // pred_check
          %p250 = pneg %p106
        $region18: #{tpu_custom_call.1} parent=11 // pred_check_branch
          %252 = sbr.rel (%p250) target = $region20
        $region19: #{tpu_custom_call.1} parent=11 // pred_region
          _
        $region20: #{tpu_custom_call.1} parent=11 // pred_fallthru
          _
        // Predicated region
        $region21: #{tpu_custom_call.1} parent=11 // pred_check
          %p253 = pneg %p127
        $region22: #{tpu_custom_call.1} parent=11 // pred_check_branch
          %255 = sbr.rel (%p253) target = $region24
        $region23: #{tpu_custom_call.1} parent=11 // pred_region
          %s257 = ssub.s32 256, 256
          %258 = vsyncadd [#allocation6], %s257
          %s259 = sshll.u32 [#allocation5], 4
          %s260 = int_to_ptr.vmem [resolvable:$true] %s259
          %265 = dma.hbm_to_vmem [thread:$0]  %s3, 256, %s260, [#allocation6], 64, 64, 4
        $region24: #{tpu_custom_call.1} parent=11 // pred_fallthru
          _
        // Predicated region
        $region25: #{tpu_custom_call.1} parent=11 // pred_check
          %p266 = pneg %p148
        $region26: #{tpu_custom_call.1} parent=11 // pred_check_branch
          %268 = sbr.rel (%p266) target = $region28
        $region27: #{tpu_custom_call.1} parent=11 // pred_region
          _
        $region28: #{tpu_custom_call.1} parent=11 // pred_fallthru
          _
      $region12: #{tpu_custom_call.1} parent=5 // pred_fallthru
        _
      %p269 = scmp.lt.s32.totalorder %s24, 4
      // Predicated region
      $region29: #{tpu_custom_call.1} parent=5 // pred_check
        %p270 = pneg %p269
      $region30: #{tpu_custom_call.1} parent=5 // pred_check_branch
        %272 = sbr.rel (%p270) target = $region32
      $region31: #{tpu_custom_call.1} parent=5 // pred_region
        // Predicated region
        $region33: #{tpu_custom_call.1} parent=31 // pred_check
          %p273 = pneg %p58
        $region34: #{tpu_custom_call.1} parent=31 // pred_check_branch
          %275 = sbr.rel (%p273) target = $region36
        $region35: #{tpu_custom_call.1} parent=31 // pred_region
          %s276 = sand.u32 %s48, 1
          %s277 = scalar_lea.sflag [#allocation3], %s276
          %s278 = sand.u32 %s48, 1
          %s279 = smul.addr %s278, 16
          %s280 = scalar_lea.vmem [#allocation2], %s279
          %s281 = smul.u32 2, %s32
          %s283 = ssub.s32 256, 256
          %284 = vsyncadd %s277, %s283
          %s285 = smul.addr %s31, 4
          %s286 = sadd.s32 %s281, %s285
          %s287 = smul.addr %s286, 128
          %s288 = scalar_lea.hbm %s0, %s287
          %s289 = sshll.u32 %s280, 4
          %s290 = int_to_ptr.vmem [resolvable:$true] %s289
          %295 = dma.hbm_to_vmem [thread:$0]  %s288, 256, %s290, %s277, 128, 128, 8
        $region36: #{tpu_custom_call.1} parent=31 // pred_fallthru
          _
      $region32: #{tpu_custom_call.1} parent=5 // pred_fallthru
        _
      %p296 = scmp.le.s32.totalorder 1, %s24
      %p297 = scmp.lt.s32.totalorder %s24, 5
      %p298 = pnand %p296, %p297
      %p299 = pneg %p298
      // Predicated region
      $region37: #{tpu_custom_call.1} parent=5 // pred_check
        _
      $region38: #{tpu_custom_call.1} parent=5 // pred_check_branch
        %301 = sbr.rel (%p298) target = $region40
      $region39: #{tpu_custom_call.1} parent=5 // pred_region
        %s302 = ssub.s32 %s24, 1
        %s303 = sand.u32 %s51, 1
        %s304 = scalar_lea.sflag [#allocation3], %s303
        %s305 = sand.u32 %s51, 1
        %s306 = smul.addr %s305, 16
        %s307 = scalar_lea.vmem [#allocation2], %s306
        // Predicated region
        $region41: #{tpu_custom_call.1} parent=39 // pred_check
          %p308 = pneg %p64
        $region42: #{tpu_custom_call.1} parent=39 // pred_check_branch
          %310 = sbr.rel (%p308) target = $region44
        $region43: #{tpu_custom_call.1} parent=39 // pred_region
          %311 = dma.done %s304, 256
        $region44: #{tpu_custom_call.1} parent=39 // pred_fallthru
          _
        // Predicated region
        $region45: #{tpu_custom_call.1} parent=39 // pred_check
          %p312 = pneg %p127
        $region46: #{tpu_custom_call.1} parent=39 // pred_check_branch
          %314 = sbr.rel (%p312) target = $region48
        $region47: #{tpu_custom_call.1} parent=39 // pred_region
          %315 = dma.done [#allocation6], 256
        $region48: #{tpu_custom_call.1} parent=39 // pred_fallthru
          _
        %s316 = sand.u32 %s51, 1
        %s317 = scalar_lea.sflag [#allocation3], %s316
        %s318 = sand.u32 %s51, 1
        %s319 = smul.addr %s318, 16
        %s320 = scalar_lea.vmem [#allocation2], %s319
        %p321 = pneg %p64
        %p322 = pneg %p61
        %p323 = pneg %p85
        %p324 = pneg %p82
        %p325 = pneg %p106
        %p326 = pneg %p103
        %p327 = pneg %p127
        %p328 = pneg %p124
        %p329 = pneg %p148
        %p330 = pneg %p145
        %p331 = pneg %p176
        %p332 = pneg %p173
        %s333 = sand.u32 %s163, 1
        %s334 = scalar_lea.sflag [#allocation4], %s333
        %s335 = sand.u32 %s163, 1
        %s336 = smul.addr %s335, 8
        %s337 = scalar_lea.vmem [#allocation7], %s336
        %p338 = pneg %p204
        %p339 = pneg %p201
        %s340 = sand.u32 %s29, 1
        %s341 = scalar_lea.sflag [#allocation9], %s340
        %s342 = sand.u32 %s191, 1
        %s343 = smul.addr %s342, 8
        %s344 = scalar_lea.vmem [#allocation8], %s343
        %p345 = pneg %p232
        %p346 = pneg %p229
        %s347 = sand.u32 %s29, 1
        %s348 = scalar_lea.sflag [#allocation9], %s347
        %s349 = sand.u32 %s219, 1
        %s350 = smul.addr %s349, 8
        %s351 = scalar_lea.vmem [#allocation10], %s350
        %s352 = smul.u32 2, %s34
        %s353 = smul.u32 2, %s34
        %s354 = smul.u32 2, %s34
        %s355 = smul.u32 2, %s34
        %v357 = vld [vmem:[%s307] sm:$0xff]
        %v358 = vld [vmem:[%s307 + $0x8] sm:$0xff]
        %v359 = vld [vmem:[%s1] sm:$0x1]
        %v360 = vld [vmem:[%s2] sm:$0x1]
        %vm361 = vcmask 261120
        %v362 = vsel %vm361, %v357, 0.0
        %363 = vadd.xlane.f32.xlu0 %v362
        %v364 = vpop.xlane.xlu0 %363
        %v365 = vsel %vm361, %v358, 0.0
        %366 = vadd.xlane.f32.xlu0 %v365
        %v367 = vpop.xlane.xlu0 %366
        %v368 = vrcp.pop 32.0
        %v369 = vmul.f32 %v364, %v368
        %v370 = vmul.f32 %v367, %v368
        %v371 = vsub.f32 %v357, %v369
        %v372 = vsub.f32 %v358, %v370
        %v373 = vmul.f32 %v371, %v371
        %v374 = vmul.f32 %v372, %v372
        %v375 = vsel %vm361, %v373, 0.0
        %376 = vadd.xlane.f32.xlu0 %v375
        %v377 = vpop.xlane.xlu0 %376
        %v378 = vsel %vm361, %v374, 0.0
        %379 = vadd.xlane.f32.xlu0 %v378
        %v380 = vpop.xlane.xlu0 %379
        %v381 = vmul.f32 %v377, %v368
        %v382 = vmul.f32 %v380, %v368
        %v383 = vadd.f32 %v381, 1e-06
        %v384 = vadd.f32 %v382, 1e-06
        %v385 = vrsqrt.pop %v383
        %v386 = vrsqrt.pop %v384
        %v387 = vmul.f32 %v371, %v385
        %v388 = vmul.f32 %v372, %v386
        %v390 = vlaneseq
        %v391 = vshrl.u32 %v390, 7
        %v392 = vsub.s32 0, %v391
        %v393 = vrot.slane %v359, %v392
        %v395 = vmul.f32 %v387, %v393
        %v396 = vmul.f32 %v388, %v393
        %v398 = vlaneseq
        %v399 = vshrl.u32 %v398, 7
        %v400 = vsub.s32 0, %v399
        %v401 = vrot.slane %v360, %v400
        %v403 = vadd.f32 %v395, %v401
        %v404 = vadd.f32 %v396, %v401
        %v405 = vpack.c.bf16 %v404, %v403
        %v406 = vld [vmem:[#allocation5] sm:$0xf]
        %v407 = vld [vmem:[#allocation5 + $0x4] sm:$0xf]
        %v408 = vld [vmem:[#allocation5 + $0x8] sm:$0xf]
        %v409 = vld [vmem:[#allocation5 + $0xc] sm:$0xf]
        %v410 = vld [vmem:[%s4] sm:$0x1]
        %v412 = vlaneseq
        %v413 = vshrl.u32 %v412, 7
        %v414 = vsub.s32 0, %v413
        %v415 = vrot.slane %v410, %v414
        %v421 = vunpack.c.l.b16 %v406
        %v422 = vunpack.c.l.b16 %v407
        %v423 = vunpack.c.l.b16 %v408
        %v424 = vunpack.c.l.b16 %v409
        %v425 = vpack.c.b16 %v422, %v421
        %v426 = vpack.c.b16 %v424, %v423
        %v430 = vsel %vm361, %v405, 0
        %432 = vmatprep.subr.bf16.mxu0 0
        %433 = vmatpush1.bf16.msra.mxu0 %v425
        %434 = vmatprep.subr.bf16.mxu0 0
        %435 = vmatpush1.bf16.msra.mxu0 %v426
        %436 = vmatprep.subr.bf16.mxu0 0
        %437 = vmatpush1.bf16.msra.mxu0 0
        %438 = vmatprep.subr.bf16.mxu0 0
        %439 = vmatpush1.bf16.msra.mxu0 0
        %440 = vmatprep.subr.bf16.mxu0 0
        %441 = vmatpush1.bf16.msra.mxu0 0
        %442 = vmatprep.subr.bf16.mxu0 0
        %443 = vmatpush1.bf16.msra.mxu0 0
        %444 = vmatprep.subr.bf16.mxu0 0
        %445 = vmatpush1.bf16.msra.mxu0 0
        %446 = vmatprep.subr.bf16.mxu0 0
        %447 = vmatpush1.bf16.msra.mxu0 0
        %448 = vmatprep.subr.bf16.mxu0 0
        %449 = vmatpush1.bf16.msra.mxu0 0
        %450 = vmatprep.subr.bf16.mxu0 0
        %451 = vmatpush1.bf16.msra.mxu0 0
        %452 = vmatprep.subr.bf16.mxu0 0
        %453 = vmatpush1.bf16.msra.mxu0 0
        %454 = vmatprep.subr.bf16.mxu0 0
        %455 = vmatpush1.bf16.msra.mxu0 0
        %456 = vmatprep.subr.bf16.mxu0 0
        %457 = vmatpush1.bf16.msra.mxu0 0
        %458 = vmatprep.subr.bf16.mxu0 0
        %459 = vmatpush1.bf16.msra.mxu0 0
        %460 = vmatprep.subr.bf16.mxu0 0
        %461 = vmatpush1.bf16.msra.mxu0 0
        %462 = vmatprep.subr.bf16.mxu0 0
        %463 = vmatpush1.bf16.msra.mxu0 0
        %464 = vmatprep.mubr.bf16.mxu0 0
        %465 = vmatmul.mubr.bf16.gmra.mrb[0].mxu0 %v430
        %v466 = vpop.f32.mrb[0].mxu0
        %v467 = vadd.f32 %v415, %v466
        %v468 = vpop.f32.mrb[0].mxu0
        %v469 = vpop.f32.mrb[0].mxu0
        %v470 = vadd.f32 %v415, %v469
        %v471 = vpop.f32.mrb[0].mxu0
        %472 = vdwg.mxu0
        %v473 = vpack.c.bf16 %v470, %v467
        %v475 = vunpack.c.l.b16 %v473
        %v476 = vunpack.c.h.b16 %v473
        %v477 = vpack.c.b16 %v475, %v475
        %v478 = vpack.c.b16 %v476, %v476
        %vm481 = vcmask 257024
        %482 = vst.msk [vmem:[%s337] sm:$0xf] %vm481, %v477
        %483 = vst.msk [vmem:[%s337 + $0x4] sm:$0xf] %vm481, %v478
        %484 = vrot.lane.b32.xlu0 %v477, 96
        %v485 = vpop.permute.xlu0 %484
        %486 = vrot.lane.b32.xlu0 %v478, 96
        %v487 = vpop.permute.xlu0 %486
        %490 = vst.msk [vmem:[%s344] sm:$0xf] %vm481, %v485
        %491 = vst.msk [vmem:[%s344 + $0x4] sm:$0xf] %vm481, %v487
        %492 = vrot.lane.b32.xlu0 %v477, 64
        %v493 = vpop.permute.xlu0 %492
        %494 = vrot.lane.b32.xlu0 %v478, 64
        %v495 = vpop.permute.xlu0 %494
        %498 = vst.msk [vmem:[%s351] sm:$0xf] %vm481, %v493
        %499 = vst.msk [vmem:[%s351 + $0x4] sm:$0xf] %vm481, %v495
        %s500 = sand.u32 %s163, 1
        %s501 = scalar_lea.sflag [#allocation4], %s500
        %s502 = sand.u32 %s163, 1
        %s503 = smul.addr %s502, 8
        %s504 = scalar_lea.vmem [#allocation7], %s503
        %s505 = sand.u32 %s29, 1
        %s506 = scalar_lea.sflag [#allocation9], %s505
        %s507 = sand.u32 %s191, 1
        %s508 = smul.addr %s507, 8
        %s509 = scalar_lea.vmem [#allocation8], %s508
        %s510 = sand.u32 %s29, 1
        %s511 = scalar_lea.sflag [#allocation9], %s510
        %s512 = sand.u32 %s219, 1
        %s513 = smul.addr %s512, 8
        %s514 = scalar_lea.vmem [#allocation10], %s513
        // Predicated region
        $region49: #{tpu_custom_call.1} parent=39 // pred_check
          %p515 = pneg %p173
        $region50: #{tpu_custom_call.1} parent=39 // pred_check_branch
          %517 = sbr.rel (%p515) target = $region52
        $region51: #{tpu_custom_call.1} parent=39 // pred_region
          %s518 = smul.u32 2, %s34
          %s520 = ssub.s32 128, 128
          %521 = vsyncadd %s501, %s520
          %s522 = smul.addr %s33, 4
          %s523 = sadd.s32 %s518, %s522
          %s524 = smul.addr %s523, 64
          %s525 = scalar_lea.hbm %s5, %s524
          %s526 = sshll.u32 %s504, 4
          %s527 = int_to_ptr.vmem [resolvable:$true] %s526
          %532 = dma.vmem_to_hbm [thread:$0]  %s527, 128, %s525, %s501, 64, 64, 4
        $region52: #{tpu_custom_call.1} parent=39 // pred_fallthru
          _
        // Predicated region
        $region53: #{tpu_custom_call.1} parent=39 // pred_check
          %p533 = pneg %p201
        $region54: #{tpu_custom_call.1} parent=39 // pred_check_branch
          %535 = sbr.rel (%p533) target = $region56
        $region55: #{tpu_custom_call.1} parent=39 // pred_region
          %s536 = smul.u32 2, %s34
          %s538 = ssub.s32 128, 128
          %539 = vsyncadd %s506, %s538
          %s540 = smul.addr %s33, 4
          %s541 = sadd.s32 %s536, %s540
          %s542 = smul.addr %s541, 64
          %s543 = scalar_lea.hbm %s6, %s542
          %s544 = sshll.u32 %s509, 4
          %s545 = int_to_ptr.vmem [resolvable:$true] %s544
          %550 = dma.vmem_to_hbm [thread:$0]  %s545, 128, %s543, %s506, 64, 64, 4
        $region56: #{tpu_custom_call.1} parent=39 // pred_fallthru
          _
        // Predicated region
        $region57: #{tpu_custom_call.1} parent=39 // pred_check
          %p551 = pneg %p229
        $region58: #{tpu_custom_call.1} parent=39 // pred_check_branch
          %553 = sbr.rel (%p551) target = $region60
        $region59: #{tpu_custom_call.1} parent=39 // pred_region
          %s554 = smul.u32 2, %s34
          %s556 = ssub.s32 128, 128
          %557 = vsyncadd %s511, %s556
          %s558 = smul.addr %s33, 4
          %s559 = sadd.s32 %s554, %s558
          %s560 = smul.addr %s559, 64
          %s561 = scalar_lea.hbm %s7, %s560
          %s562 = sshll.u32 %s514, 4
          %s563 = int_to_ptr.vmem [resolvable:$true] %s562
          %568 = dma.vmem_to_hbm [thread:$0]  %s563, 128, %s561, %s511, 64, 64, 4
        $region60: #{tpu_custom_call.1} parent=39 // pred_fallthru
          _
      $region40: #{tpu_custom_call.1} parent=5 // pred_fallthru
        _
      %p569 = scmp.le.s32.totalorder 2, %s24
      // Predicated region
      $region61: #{tpu_custom_call.1} parent=5 // pred_check
        %p570 = pneg %p569
      $region62: #{tpu_custom_call.1} parent=5 // pred_check_branch
        %572 = sbr.rel (%p570) target = $region64
      $region63: #{tpu_custom_call.1} parent=5 // pred_region
        %s573 = ssub.s32 %s24, 2
        // Predicated region
        $region65: #{tpu_custom_call.1} parent=63 // pred_check
          %p574 = pneg %p179
        $region66: #{tpu_custom_call.1} parent=63 // pred_check_branch
          %576 = sbr.rel (%p574) target = $region68
        $region67: #{tpu_custom_call.1} parent=63 // pred_region
          %s577 = sand.u32 %s164, 1
          %s578 = scalar_lea.sflag [#allocation4], %s577
          %s579 = sand.u32 %s164, 1
          %s580 = smul.addr %s579, 8
          %s581 = scalar_lea.vmem [#allocation7], %s580
          %582 = dma.done %s578, 128
        $region68: #{tpu_custom_call.1} parent=63 // pred_fallthru
          _
        // Predicated region
        $region69: #{tpu_custom_call.1} parent=63 // pred_check
          %p583 = pneg %p207
        $region70: #{tpu_custom_call.1} parent=63 // pred_check_branch
          %585 = sbr.rel (%p583) target = $region72
        $region71: #{tpu_custom_call.1} parent=63 // pred_region
          %s586 = sand.u32 %s30, 1
          %s587 = scalar_lea.sflag [#allocation9], %s586
          %s588 = sand.u32 %s192, 1
          %s589 = smul.addr %s588, 8
          %s590 = scalar_lea.vmem [#allocation8], %s589
          %591 = dma.done %s587, 128
        $region72: #{tpu_custom_call.1} parent=63 // pred_fallthru
          _
        // Predicated region
        $region73: #{tpu_custom_call.1} parent=63 // pred_check
          %p592 = pneg %p235
        $region74: #{tpu_custom_call.1} parent=63 // pred_check_branch
          %594 = sbr.rel (%p592) target = $region76
        $region75: #{tpu_custom_call.1} parent=63 // pred_region
          %s595 = sand.u32 %s30, 1
          %s596 = scalar_lea.sflag [#allocation9], %s595
          %s597 = sand.u32 %s220, 1
          %s598 = smul.addr %s597, 8
          %s599 = scalar_lea.vmem [#allocation10], %s598
          %600 = dma.done %s596, 128
        $region76: #{tpu_custom_call.1} parent=63 // pred_fallthru
          _
      $region64: #{tpu_custom_call.1} parent=5 // pred_fallthru
        _
    $region6: #{tpu_custom_call.1} parent=1 // loop_footer
      %s28 = sadd.s32 1, %s24
    $region7: #{tpu_custom_call.1} parent=1 // loop_footer_branch
      %23 = sbr.rel target = $region3
    $region8: #{tpu_custom_call.1} parent=1 // loop_exit
      _
    %601 = vsyncpa [#allocation3], 1
    %s602 = scalar_lea.sflag [#allocation3], 1
    %603 = vsyncpa %s602, 1
    %604 = vsyncpa [#allocation6], 1
    %605 = vsyncpa [#allocation4], 1
    %s606 = scalar_lea.sflag [#allocation4], 1
    %607 = vsyncpa %s606, 1
    %608 = vsyncpa [#allocation9], 1
    %s609 = scalar_lea.sflag [#allocation9], 1
    %610 = vsyncpa %s609, 1

</llo_original>
